<compile_context>
chip_gen: v7x
topology: tpu7x:2x2x1
jax: 0.10.0
libtpu: 0.0.40
codegen_flags: <defaults>
</compile_context>

<pallas_src>
import jax
import jax.numpy as jnp
from jax.experimental import pallas as pl
from jax.experimental.pallas import tpu as pltpu


def _round_up(x, m):
    return ((x + m - 1) // m) * m


# --------------------------------------------------------------------------
# Kernel 1 (runs once, no grid): quad-side branch.
#   rhs_t = [ (tanh(quad @ W1q + b1q) @ W2q + b2q) * exp(-eq * ||quad||^2) ].T
# Emitted transposed ([R, Q]) so the main kernel does a plain [N,R]x[R,Q] dot.
# --------------------------------------------------------------------------
def _quad_rhs_t_kernel(eq_ref, quad_ref, w1q_ref, b1q_ref, w2q_ref, b2q_ref,
                       rhs_t_ref):
    f32 = jnp.float32
    quad = quad_ref[...]
    # r_func(quad_x, eq_param) = exp(-eq * ||quad_x||^2)   -> [Qp, 1]
    y = jnp.exp(-eq_ref[0] * jnp.sum(quad * quad, axis=-1, keepdims=True))
    # mlp_quad: Linear -> tanh -> Linear   (dropout p=0.0 omitted)
    hq = jnp.tanh(jnp.dot(quad, w1q_ref[...], preferred_element_type=f32)
                  + b1q_ref[...])
    rhs = (jnp.dot(hq, w2q_ref[...], preferred_element_type=f32)
           + b2q_ref[...]) * y                                   # [Qp, Rp]
    # Single transpose, done exactly once (never inside the hot N-tile loop).
    rhs_t_ref[...] = jnp.transpose(rhs).astype(rhs_t_ref.dtype)  # [Rp, Qp]


# --------------------------------------------------------------------------
# Kernel 2 (grid = (N tiles [parallel], Q chunks [arbitrary])):
#   lhs   = mlp_x(x_tile)                       (qi == 0, cached in scratch)
#   acc  += (lhs @ rhs_t[:, q_chunk]) @ W1o[q_chunk, :]
#   out   = tanh(acc + b1o) @ W2o + b2o         (qi == last, lane-dense store)
# --------------------------------------------------------------------------
def _mlp_tile_kernel(x_ref, w1x_ref, b1x_ref, w2x_ref, b2x_ref,
                     rhs_t_ref, w1o_ref, b1o_ref, w2o_ref, b2o_ref,
                     out_ref, lhs_sc, acc_sc):
    f32 = jnp.float32
    qi = pl.program_id(1)

    @pl.when(qi == 0)
    def _init():
        # mlp_x: Linear -> tanh -> Linear, computed once per N tile.
        hx = jnp.tanh(jnp.dot(x_ref[...], w1x_ref[...],
                              preferred_element_type=f32) + b1x_ref[...])
        lhs_sc[...] = (jnp.dot(hx, w2x_ref[...], preferred_element_type=f32)
                       + b2x_ref[...])                            # [TN, Rp]
        acc_sc[...] = jnp.zeros_like(acc_sc)

    # One Q-chunk of mid = lhs @ rhs.T, folded straight into mlp_out layer 1.
    mid = jnp.dot(lhs_sc[...], rhs_t_ref[...],
                  preferred_element_type=f32)                     # [TN, TQ]
    acc_sc[...] += jnp.dot(mid, w1o_ref[...],
                           preferred_element_type=f32)            # [TN, Hp]

    @pl.when(qi == pl.num_programs(1) - 1)
    def _finalize():
        # mlp_out: tanh -> Linear (last layer, no activation).
        ho = jnp.tanh(acc_sc[...] + b1o_ref[...])
        out = (jnp.dot(ho, w2o_ref[...], preferred_element_type=f32)
               + b2o_ref[...])                                    # [TN, Dop]
        out_ref[...] = out.astype(out_ref.dtype)


def decgreen_forward(x, eq_param, quad_x, params, *, tile_n=512, tile_q=512):
    """Fused forward. x:[N,Din], eq_param:[1] f32, quad_x:[Q,Dq]."""
    f32 = jnp.float32
    N, Din = x.shape
    Q, Dq = quad_x.shape
    H = params["w1x"].shape[1]
    R = params["w2x"].shape[1]
    Do = params["w2o"].shape[1]

    # Pad feature dims to 128 (lane-dense MXU/VPU work, lane-dense output
    # stores); Din/Dq stay unpadded (full-extent last dim, tiny DMA).
    Hp, Rp, Dop = (_round_up(d, 128) for d in (H, R, Do))
    Qp = _round_up(Q, 128)

    tile_q = max(128, (min(tile_q, Qp) // 128) * 128)
    Qp = _round_up(Qp, tile_q)
    tile_n = max(8, min(_round_up(tile_n, 8), _round_up(N, 8)))
    Np = _round_up(N, tile_n)

    def pad2(a, rows, cols):
        a = a.astype(f32)
        return jnp.pad(a, ((0, rows - a.shape[0]), (0, cols - a.shape[1])))

    x_p = pad2(x, Np, Din)
    quad_p = pad2(quad_x, Qp, Dq)
    w1x = pad2(params["w1x"], Din, Hp); b1x = pad2(params["b1x"], 1, Hp)
    w2x = pad2(params["w2x"], Hp,  Rp); b2x = pad2(params["b2x"], 1, Rp)
    w1q = pad2(params["w1q"], Dq,  Hp); b1q = pad2(params["b1q"], 1, Hp)
    w2q = pad2(params["w2q"], Hp,  Rp); b2q = pad2(params["b2q"], 1, Rp)
    w1o = pad2(params["w1o"], Qp,  Hp); b1o = pad2(params["b1o"], 1, Hp)
    w2o = pad2(params["w2o"], Hp, Dop); b2o = pad2(params["b2o"], 1, Dop)

    smem = pl.BlockSpec(memory_space=pltpu.MemorySpace.SMEM)
    vmem = pl.BlockSpec(memory_space=pltpu.MemorySpace.VMEM)

    # ---- kernel 1: quad branch, once --------------------------------------
    rhs_t = pl.pallas_call(
        _quad_rhs_t_kernel,
        out_shape=jax.ShapeDtypeStruct((Rp, Qp), f32),
        in_specs=[smem] + [vmem] * 5,
        out_specs=vmem,
    )(eq_param.astype(f32), quad_p, w1q, b1q, w2q, b2q)

    # ---- kernel 2: gridded MLP pipeline ------------------------------------
    n_tiles = Np // tile_n
    q_tiles = Qp // tile_q

    const = lambda shape: pl.BlockSpec(shape, lambda ni, qi: (0, 0))
    in_specs = [
        pl.BlockSpec((tile_n, Din), lambda ni, qi: (ni, 0)),   # x tile
        const((Din, Hp)), const((1, Hp)),                      # w1x, b1x
        const((Hp, Rp)),  const((1, Rp)),                      # w2x, b2x
        pl.BlockSpec((Rp, tile_q), lambda ni, qi: (0, qi)),    # rhs_t chunk
        pl.BlockSpec((tile_q, Hp), lambda ni, qi: (qi, 0)),    # w1o chunk
        const((1, Hp)),                                        # b1o
        const((Hp, Dop)), const((1, Dop)),                     # w2o, b2o
    ]
    out_specs = pl.BlockSpec((tile_n, Dop), lambda ni, qi: (ni, 0))

    flops = 2 * Np * (Din * Hp + Hp * Rp + Rp * Qp + Qp * Hp + Hp * Dop)
    bytes_accessed = 4 * (Np * Din + Rp * Qp + Din * Hp + Hp * Rp + Qp * Hp
                          + Hp * Dop + 3 * Hp + Rp + Dop + Np * Dop)
    cost = pl.CostEstimate(flops=int(flops),
                           transcendentals=int(2 * Np * Hp),
                           bytes_accessed=int(bytes_accessed))

    # VMEM budget: double-buffered x/out/rhs_t/w1o blocks + resident weights
    # + scratches + intermediates; keep headroom, cap at 64 MiB (v7x-safe).
    vmem_need = 4 * (2 * tile_n * (Din + Dop)
                     + 2 * (Rp * tile_q + tile_q * Hp)
                     + Din * Hp + Hp * Rp + Hp * Dop + 3 * Hp + Rp + Dop
                     + tile_n * (Rp + Hp)
                     + tile_n * (Hp + tile_q + Hp + Dop))
    vmem_limit = int(min(max(2 * vmem_need, 16 * 1024 * 1024),
                         64 * 1024 * 1024))

    out_p = pl.pallas_call(
        _mlp_tile_kernel,
        out_shape=jax.ShapeDtypeStruct((Np, Dop), f32),
        grid_spec=pltpu.PrefetchScalarGridSpec(
            num_scalar_prefetch=0,
            grid=(n_tiles, q_tiles),
            in_specs=in_specs,
            out_specs=out_specs,
            scratch_shapes=[pltpu.VMEM((tile_n, Rp), f32),   # lhs cache
                            pltpu.VMEM((tile_n, Hp), f32)]), # mlp_out acc
        compiler_params=pltpu.CompilerParams(
            dimension_semantics=("parallel", "arbitrary"),
            vmem_limit_bytes=vmem_limit),
        cost_estimate=cost,
    )(x_p, w1x, b1x, w2x, b2x, rhs_t, w1o, b1o, w2o, b2o)

    return out_p[:N, :Do]


# --------------------------------------------------------------------------
# Pure-JAX reference mirroring the PyTorch module forward (dropout p=0.0).
# --------------------------------------------------------------------------
def _reference_forward(x, eq_param, quad_x, p):
    eq = eq_param[0]
    y = jnp.exp(-eq * jnp.sum(quad_x * quad_x, axis=-1, keepdims=True))
    hq = jnp.tanh(quad_x @ p["w1q"] + p["b1q"])
    rhs = (hq @ p["w2q"] + p["b2q"]) * y
    hx = jnp.tanh(x @ p["w1x"] + p["b1x"])
    lhs = hx @ p["w2x"] + p["b2x"]
    mid = lhs @ rhs.T
    ho = jnp.tanh(mid @ p["w1o"] + p["b1o"])
    return ho @ p["w2o"] + p["b2o"]


def _init_params(key, d_in, d_quad, hidden, rank, n_quad, d_out):
    ks = jax.random.split(key, 12)

    def lin(kw, kb, fan_in, fan_out):
        lim = 1.0 / jnp.sqrt(jnp.float32(fan_in))
        w = jax.random.uniform(kw, (fan_in, fan_out), jnp.float32, -lim, lim)
        b = jax.random.uniform(kb, (1, fan_out), jnp.float32, -lim, lim)
        return w, b

    p = {}
    p["w1x"], p["b1x"] = lin(ks[0], ks[1], d_in, hidden)
    p["w2x"], p["b2x"] = lin(ks[2], ks[3], hidden, rank)
    p["w1q"], p["b1q"] = lin(ks[4], ks[5], d_quad, hidden)
    p["w2q"], p["b2q"] = lin(ks[6], ks[7], hidden, rank)
    p["w1o"], p["b1o"] = lin(ks[8], ks[9], n_quad, hidden)
    p["w2o"], p["b2o"] = lin(ks[10], ks[11], hidden, d_out)
    return p


if __name__ == "__main__":
    # Small shapes consistent with the module's forward:
    #   input  : [N, Din]   collocation points
    #   quad_x : [Q, Dq]    quadrature points
    #   eq_param: scalar PDE parameter
    # N=144 / Q=300 with tile_n=64 / tile_q=128 exercise multiple N tiles,
    # multiple accumulated Q chunks, and the zero-padding paths.
    N, Din, Q, Dq, H, R, Do = 144, 4, 300, 4, 32, 32, 1

    key = jax.random.PRNGKey(0)
    k_x, k_q, k_p = jax.random.split(key, 3)

    x = jax.random.normal(k_x, (N, Din), jnp.float32)
    quad_x = jax.random.uniform(k_q, (Q, Dq), jnp.float32)
    eq_param = jnp.array([0.5], dtype=jnp.float32)
    params = _init_params(k_p, Din, Dq, H, R, Q, Do)

    out = decgreen_forward(x, eq_param, quad_x, params, tile_n=64, tile_q=128)
    out = jax.block_until_ready(out)

    ref = _reference_forward(x, eq_param, quad_x, params)
    assert out.shape == (N, Do)
    max_err = float(jnp.max(jnp.abs(out - ref)))
    assert jnp.allclose(out, ref, atol=1e-3, rtol=1e-3), (
        f"mismatch vs reference, max abs err {max_err}")

    print("KERNEL_OK")
</pallas_src>

<mosaic_0001>
module attributes {stable_mosaic.version = 11 : i64} {
  func.func @_quad_rhs_t_kernel(%arg0: memref<1xf32, #tpu.memory_space<smem>>, %arg1: memref<384x4xf32, #tpu.memory_space<vmem>>, %arg2: memref<4x128xf32, #tpu.memory_space<vmem>>, %arg3: memref<1x128xf32, #tpu.memory_space<vmem>>, %arg4: memref<128x128xf32, #tpu.memory_space<vmem>>, %arg5: memref<1x128xf32, #tpu.memory_space<vmem>>, %arg6: memref<128x384xf32, #tpu.memory_space<vmem>>) attributes {dimension_semantics = [], scalar_prefetch = 0 : i64, scratch_operands = 0 : i64, tpu.core_type = #tpu.core_type<tc>} {
    %c0 = arith.constant 0 : index
    %c0_0 = arith.constant 0 : index
    %0 = vector.load %arg1[%c0, %c0_0] : memref<384x4xf32, #tpu.memory_space<vmem>>, vector<384x4xf32>
    %c0_1 = arith.constant 0 : index
    %1 = memref.load %arg0[%c0_1] : memref<1xf32, #tpu.memory_space<smem>>
    %cst = arith.constant 0.000000e+00 : f32
    %2 = arith.subf %cst, %1 : f32
    %3 = arith.mulf %0, %0 : vector<384x4xf32>
    %cst_2 = arith.constant dense<0.000000e+00> : vector<384xf32>
    %4 = vector.multi_reduction <add>, %3, %cst_2 [1] : vector<384x4xf32> to vector<384xf32>
    %5 = vector.shape_cast %4 : vector<384xf32> to vector<384x1xf32>
    %6 = vector.broadcast %2 : f32 to vector<384x1xf32>
    %7 = arith.mulf %6, %5 : vector<384x1xf32>
    %8 = math.exp %7 : vector<384x1xf32>
    %c0_3 = arith.constant 0 : index
    %c0_4 = arith.constant 0 : index
    %9 = vector.load %arg2[%c0_3, %c0_4] : memref<4x128xf32, #tpu.memory_space<vmem>>, vector<4x128xf32>
    %cst_5 = arith.constant dense<0.000000e+00> : vector<384x128xf32>
    %10 = tpu.matmul %0, %9, %cst_5 {dimension_numbers = #tpu.dot_dimension_numbers<[1], [0], [0], [1], [0, 0, 1, 1], [], []>} : vector<384x4xf32>, vector<4x128xf32>, vector<384x128xf32> -> vector<384x128xf32>
    %c0_6 = arith.constant 0 : index
    %c0_7 = arith.constant 0 : index
    %11 = vector.load %arg3[%c0_6, %c0_7] : memref<1x128xf32, #tpu.memory_space<vmem>>, vector<1x128xf32>
    %12 = vector.broadcast %11 : vector<1x128xf32> to vector<384x128xf32>
    %13 = arith.addf %10, %12 : vector<384x128xf32>
    %14 = math.tanh %13 : vector<384x128xf32>
    %c0_8 = arith.constant 0 : index
    %c0_9 = arith.constant 0 : index
    %15 = vector.load %arg4[%c0_8, %c0_9] : memref<128x128xf32, #tpu.memory_space<vmem>>, vector<128x128xf32>
    %cst_10 = arith.constant dense<0.000000e+00> : vector<384x128xf32>
    %16 = tpu.matmul %14, %15, %cst_10 {dimension_numbers = #tpu.dot_dimension_numbers<[1], [0], [0], [1], [0, 0, 1, 1], [], []>} : vector<384x128xf32>, vector<128x128xf32>, vector<384x128xf32> -> vector<384x128xf32>
    %c0_11 = arith.constant 0 : index
    %c0_12 = arith.constant 0 : index
    %17 = vector.load %arg5[%c0_11, %c0_12] : memref<1x128xf32, #tpu.memory_space<vmem>>, vector<1x128xf32>
    %18 = vector.broadcast %17 : vector<1x128xf32> to vector<384x128xf32>
    %19 = arith.addf %16, %18 : vector<384x128xf32>
    %20 = vector.broadcast %8 : vector<384x1xf32> to vector<384x128xf32>
    %21 = arith.mulf %19, %20 : vector<384x128xf32>
    %22 = tpu.transpose %21, [1, 0] : vector<384x128xf32> -> vector<128x384xf32>
    %c0_13 = arith.constant 0 : index
    %c0_14 = arith.constant 0 : index
    %23 = vector.load %arg6[%c0_13, %c0_14] : memref<128x384xf32, #tpu.memory_space<vmem>>, vector<128x384xf32>
    tpu.vector_store %arg6[%c0_13, %c0_14], %22 {strides = array<i32>} : memref<128x384xf32, #tpu.memory_space<vmem>>, vector<128x384xf32>,
    return
  }
}

</mosaic_0001>

<llo_original>
// kernel: tpu_custom_call.1
$region0: #{tpu_custom_call.1}
  #allocation0 [shape = 'u32[]', space=smem, size = 0x4, offset = 0x4, fixed_abs, tag = 'smem constant byte address 0x4 - core index']
  #allocation1 [shape = 'u32[144,128]{1,0:T(1,128)}', space=vmem, size = 0x12000, scoped, tag = 'internal scratch']
  #allocation2 [shape = 'f32[1]{0:T(128)S(6)}', space=smem, size = 0x200, scoped, tag = 'scoped memory for tpu_custom_call.1']
  %s0 = inlined_call_operand.<no memory space> [shape: f32[1], index: 0, kind: input, shape index: {}]
  %s1 = inlined_call_operand.vmem [shape: f32[384,4], index: 1, kind: input, shape index: {}]
  %s2 = inlined_call_operand.vmem [shape: f32[4,128], index: 2, kind: input, shape index: {}]
  %s3 = inlined_call_operand.vmem [shape: f32[1,128], index: 3, kind: input, shape index: {}]
  %s4 = inlined_call_operand.vmem [shape: f32[128,128], index: 4, kind: input, shape index: {}]
  %s5 = inlined_call_operand.vmem [shape: f32[1,128], index: 5, kind: input, shape index: {}]
  %s6 = inlined_call_operand.hbm [shape: f32[128,384], index: 6, kind: output, shape index: {}]
  %s7 = sld [smem:[#allocation0]]
  $region34: #{tpu_custom_call.1} parent=0
    _
  %s9 = ssub.s32 1, %s7
  %s10 = scalar_select 0, %s9, %s7
  %11 = sst [smem:[#allocation2]] %s0
  $region1: #{tpu_custom_call.1} parent=0
    #allocation3 [shape = 'u8[196608]{0}', space=vmem, size = 0x30000, scoped, tag = 'output window, operand 0, single buffered']
    #allocation4 [shape = 's32[1]{0}', space=sflag, size = 0x4, scoped, tag = 'scoped memory for tpu_custom_call.1']
    %12 = vsyncpa [#allocation4], 0
    // Predicated region
    $region2: #{tpu_custom_call.1} parent=1 // pred_check
      _
    $region3: #{tpu_custom_call.1} parent=1 // pred_check_branch
      %14 = sbr.rel (0) target = $region5
    $region4: #{tpu_custom_call.1} parent=1 // pred_region
      _
    $region5: #{tpu_custom_call.1} parent=1 // pred_fallthru
      _
    // Predicated region
    $region6: #{tpu_custom_call.1} parent=1 // pred_check
      _
    $region7: #{tpu_custom_call.1} parent=1 // pred_check_branch
      %16 = sbr.rel (0) target = $region9
    $region8: #{tpu_custom_call.1} parent=1 // pred_region
      _
    $region9: #{tpu_custom_call.1} parent=1 // pred_fallthru
      _
    // Predicated region
    $region10: #{tpu_custom_call.1} parent=1 // pred_check
      _
    $region11: #{tpu_custom_call.1} parent=1 // pred_check_branch
      %18 = sbr.rel (0) target = $region13
    $region12: #{tpu_custom_call.1} parent=1 // pred_region
      _
    $region13: #{tpu_custom_call.1} parent=1 // pred_fallthru
      _
    // Predicated region
    $region14: #{tpu_custom_call.1} parent=1 // pred_check
      _
    $region15: #{tpu_custom_call.1} parent=1 // pred_check_branch
      %20 = sbr.rel (0) target = $region17
    $region16: #{tpu_custom_call.1} parent=1 // pred_region
      _
    $region17: #{tpu_custom_call.1} parent=1 // pred_fallthru
      _
    // Predicated region
    $region18: #{tpu_custom_call.1} parent=1 // pred_check
      _
    $region19: #{tpu_custom_call.1} parent=1 // pred_check_branch
      %22 = sbr.rel (0) target = $region21
    $region20: #{tpu_custom_call.1} parent=1 // pred_region
      _
    $region21: #{tpu_custom_call.1} parent=1 // pred_fallthru
      _
    // Predicated region
    $region22: #{tpu_custom_call.1} parent=1 // pred_check
      _
    $region23: #{tpu_custom_call.1} parent=1 // pred_check_branch
      %24 = sbr.rel (0) target = $region25
    $region24: #{tpu_custom_call.1} parent=1 // pred_region
      _
    $region25: #{tpu_custom_call.1} parent=1 // pred_fallthru
      _
    %v25 = vld [vmem:[%s1] sm:$0xff]
    %v26 = vld [vmem:[%s1 + $0x8] sm:$0xff]
    %v27 = vld [vmem:[%s1 + $0x10] sm:$0xff]
    %v28 = vld [vmem:[%s1 + $0x18] sm:$0xff]
    %v29 = vld [vmem:[%s1 + $0x20] sm:$0xff]
    %v30 = vld [vmem:[%s1 + $0x28] sm:$0xff]
    %v31 = vld [vmem:[%s1 + $0x30] sm:$0xff]
    %v32 = vld [vmem:[%s1 + $0x38] sm:$0xff]
    %v33 = vld [vmem:[%s1 + $0x40] sm:$0xff]
    %v34 = vld [vmem:[%s1 + $0x48] sm:$0xff]
    %v35 = vld [vmem:[%s1 + $0x50] sm:$0xff]
    %v36 = vld [vmem:[%s1 + $0x58] sm:$0xff]
    %v37 = vld [vmem:[%s1 + $0x60] sm:$0xff]
    %v38 = vld [vmem:[%s1 + $0x68] sm:$0xff]
    %v39 = vld [vmem:[%s1 + $0x70] sm:$0xff]
    %v40 = vld [vmem:[%s1 + $0x78] sm:$0xff]
    %v41 = vld [vmem:[%s1 + $0x80] sm:$0xff]
    %v42 = vld [vmem:[%s1 + $0x88] sm:$0xff]
    %v43 = vld [vmem:[%s1 + $0x90] sm:$0xff]
    %v44 = vld [vmem:[%s1 + $0x98] sm:$0xff]
    %v45 = vld [vmem:[%s1 + $0xa0] sm:$0xff]
    %v46 = vld [vmem:[%s1 + $0xa8] sm:$0xff]
    %v47 = vld [vmem:[%s1 + $0xb0] sm:$0xff]
    %v48 = vld [vmem:[%s1 + $0xb8] sm:$0xff]
    %v49 = vld [vmem:[%s1 + $0xc0] sm:$0xff]
    %v50 = vld [vmem:[%s1 + $0xc8] sm:$0xff]
    %v51 = vld [vmem:[%s1 + $0xd0] sm:$0xff]
    %v52 = vld [vmem:[%s1 + $0xd8] sm:$0xff]
    %v53 = vld [vmem:[%s1 + $0xe0] sm:$0xff]
    %v54 = vld [vmem:[%s1 + $0xe8] sm:$0xff]
    %v55 = vld [vmem:[%s1 + $0xf0] sm:$0xff]
    %v56 = vld [vmem:[%s1 + $0xf8] sm:$0xff]
    %v57 = vld [vmem:[%s1 + $0x100] sm:$0xff]
    %v58 = vld [vmem:[%s1 + $0x108] sm:$0xff]
    %v59 = vld [vmem:[%s1 + $0x110] sm:$0xff]
    %v60 = vld [vmem:[%s1 + $0x118] sm:$0xff]
    %v61 = vld [vmem:[%s1 + $0x120] sm:$0xff]
    %v62 = vld [vmem:[%s1 + $0x128] sm:$0xff]
    %v63 = vld [vmem:[%s1 + $0x130] sm:$0xff]
    %v64 = vld [vmem:[%s1 + $0x138] sm:$0xff]
    %v65 = vld [vmem:[%s1 + $0x140] sm:$0xff]
    %v66 = vld [vmem:[%s1 + $0x148] sm:$0xff]
    %v67 = vld [vmem:[%s1 + $0x150] sm:$0xff]
    %v68 = vld [vmem:[%s1 + $0x158] sm:$0xff]
    %v69 = vld [vmem:[%s1 + $0x160] sm:$0xff]
    %v70 = vld [vmem:[%s1 + $0x168] sm:$0xff]
    %v71 = vld [vmem:[%s1 + $0x170] sm:$0xff]
    %v72 = vld [vmem:[%s1 + $0x178] sm:$0xff]
    %s73 = sld [smem:[#allocation2]]
    %s74 = ssub.f32 0.0, %s73
    %v75 = vmul.f32 %v25, %v25
    %v76 = vmul.f32 %v26, %v26
    %v77 = vmul.f32 %v27, %v27
    %v78 = vmul.f32 %v28, %v28
    %v79 = vmul.f32 %v29, %v29
    %v80 = vmul.f32 %v30, %v30
    %v81 = vmul.f32 %v31, %v31
    %v82 = vmul.f32 %v32, %v32
    %v83 = vmul.f32 %v33, %v33
    %v84 = vmul.f32 %v34, %v34
    %v85 = vmul.f32 %v35, %v35
    %v86 = vmul.f32 %v36, %v36
    %v87 = vmul.f32 %v37, %v37
    %v88 = vmul.f32 %v38, %v38
    %v89 = vmul.f32 %v39, %v39
    %v90 = vmul.f32 %v40, %v40
    %v91 = vmul.f32 %v41, %v41
    %v92 = vmul.f32 %v42, %v42
    %v93 = vmul.f32 %v43, %v43
    %v94 = vmul.f32 %v44, %v44
    %v95 = vmul.f32 %v45, %v45
    %v96 = vmul.f32 %v46, %v46
    %v97 = vmul.f32 %v47, %v47
    %v98 = vmul.f32 %v48, %v48
    %v99 = vmul.f32 %v49, %v49
    %v100 = vmul.f32 %v50, %v50
    %v101 = vmul.f32 %v51, %v51
    %v102 = vmul.f32 %v52, %v52
    %v103 = vmul.f32 %v53, %v53
    %v104 = vmul.f32 %v54, %v54
    %v105 = vmul.f32 %v55, %v55
    %v106 = vmul.f32 %v56, %v56
    %v107 = vmul.f32 %v57, %v57
    %v108 = vmul.f32 %v58, %v58
    %v109 = vmul.f32 %v59, %v59
    %v110 = vmul.f32 %v60, %v60
    %v111 = vmul.f32 %v61, %v61
    %v112 = vmul.f32 %v62, %v62
    %v113 = vmul.f32 %v63, %v63
    %v114 = vmul.f32 %v64, %v64
    %v115 = vmul.f32 %v65, %v65
    %v116 = vmul.f32 %v66, %v66
    %v117 = vmul.f32 %v67, %v67
    %v118 = vmul.f32 %v68, %v68
    %v119 = vmul.f32 %v69, %v69
    %v120 = vmul.f32 %v70, %v70
    %v121 = vmul.f32 %v71, %v71
    %v122 = vmul.f32 %v72, %v72
    %vm123 = vcmask 31744
    %v124 = vsel %vm123, %v75, 0.0
    %125 = vadd.xlane.f32.xlu0 %v124
    %v126 = vpop.xlane.xlu0 %125
    %v127 = vsel %vm123, %v76, 0.0
    %128 = vadd.xlane.f32.xlu0 %v127
    %v129 = vpop.xlane.xlu0 %128
    %v130 = vsel %vm123, %v77, 0.0
    %131 = vadd.xlane.f32.xlu0 %v130
    %v132 = vpop.xlane.xlu0 %131
    %v133 = vsel %vm123, %v78, 0.0
    %134 = vadd.xlane.f32.xlu0 %v133
    %v135 = vpop.xlane.xlu0 %134
    %v136 = vsel %vm123, %v79, 0.0
    %137 = vadd.xlane.f32.xlu0 %v136
    %v138 = vpop.xlane.xlu0 %137
    %v139 = vsel %vm123, %v80, 0.0
    %140 = vadd.xlane.f32.xlu0 %v139
    %v141 = vpop.xlane.xlu0 %140
    %v142 = vsel %vm123, %v81, 0.0
    %143 = vadd.xlane.f32.xlu0 %v142
    %v144 = vpop.xlane.xlu0 %143
    %v145 = vsel %vm123, %v82, 0.0
    %146 = vadd.xlane.f32.xlu0 %v145
    %v147 = vpop.xlane.xlu0 %146
    %v148 = vsel %vm123, %v83, 0.0
    %149 = vadd.xlane.f32.xlu0 %v148
    %v150 = vpop.xlane.xlu0 %149
    %v151 = vsel %vm123, %v84, 0.0
    %152 = vadd.xlane.f32.xlu0 %v151
    %v153 = vpop.xlane.xlu0 %152
    %v154 = vsel %vm123, %v85, 0.0
    %155 = vadd.xlane.f32.xlu0 %v154
    %v156 = vpop.xlane.xlu0 %155
    %v157 = vsel %vm123, %v86, 0.0
    %158 = vadd.xlane.f32.xlu0 %v157
    %v159 = vpop.xlane.xlu0 %158
    %v160 = vsel %vm123, %v87, 0.0
    %161 = vadd.xlane.f32.xlu0 %v160
    %v162 = vpop.xlane.xlu0 %161
    %v163 = vsel %vm123, %v88, 0.0
    %164 = vadd.xlane.f32.xlu0 %v163
    %v165 = vpop.xlane.xlu0 %164
    %v166 = vsel %vm123, %v89, 0.0
    %167 = vadd.xlane.f32.xlu0 %v166
    %v168 = vpop.xlane.xlu0 %167
    %v169 = vsel %vm123, %v90, 0.0
    %170 = vadd.xlane.f32.xlu0 %v169
    %v171 = vpop.xlane.xlu0 %170
    %v172 = vsel %vm123, %v91, 0.0
    %173 = vadd.xlane.f32.xlu0 %v172
    %v174 = vpop.xlane.xlu0 %173
    %v175 = vsel %vm123, %v92, 0.0
    %176 = vadd.xlane.f32.xlu0 %v175
    %v177 = vpop.xlane.xlu0 %176
    %v178 = vsel %vm123, %v93, 0.0
    %179 = vadd.xlane.f32.xlu0 %v178
    %v180 = vpop.xlane.xlu0 %179
    %v181 = vsel %vm123, %v94, 0.0
    %182 = vadd.xlane.f32.xlu0 %v181
    %v183 = vpop.xlane.xlu0 %182
    %v184 = vsel %vm123, %v95, 0.0
    %185 = vadd.xlane.f32.xlu0 %v184
    %v186 = vpop.xlane.xlu0 %185
    %v187 = vsel %vm123, %v96, 0.0
    %188 = vadd.xlane.f32.xlu0 %v187
    %v189 = vpop.xlane.xlu0 %188
    %v190 = vsel %vm123, %v97, 0.0
    %191 = vadd.xlane.f32.xlu0 %v190
    %v192 = vpop.xlane.xlu0 %191
    %v193 = vsel %vm123, %v98, 0.0
    %194 = vadd.xlane.f32.xlu0 %v193
    %v195 = vpop.xlane.xlu0 %194
    %v196 = vsel %vm123, %v99, 0.0
    %197 = vadd.xlane.f32.xlu0 %v196
    %v198 = vpop.xlane.xlu0 %197
    %v199 = vsel %vm123, %v100, 0.0
    %200 = vadd.xlane.f32.xlu0 %v199
    %v201 = vpop.xlane.xlu0 %200
    %v202 = vsel %vm123, %v101, 0.0
    %203 = vadd.xlane.f32.xlu0 %v202
    %v204 = vpop.xlane.xlu0 %203
    %v205 = vsel %vm123, %v102, 0.0
    %206 = vadd.xlane.f32.xlu0 %v205
    %v207 = vpop.xlane.xlu0 %206
    %v208 = vsel %vm123, %v103, 0.0
    %209 = vadd.xlane.f32.xlu0 %v208
    %v210 = vpop.xlane.xlu0 %209
    %v211 = vsel %vm123, %v104, 0.0
    %212 = vadd.xlane.f32.xlu0 %v211
    %v213 = vpop.xlane.xlu0 %212
    %v214 = vsel %vm123, %v105, 0.0
    %215 = vadd.xlane.f32.xlu0 %v214
    %v216 = vpop.xlane.xlu0 %215
    %v217 = vsel %vm123, %v106, 0.0
    %218 = vadd.xlane.f32.xlu0 %v217
    %v219 = vpop.xlane.xlu0 %218
    %v220 = vsel %vm123, %v107, 0.0
    %221 = vadd.xlane.f32.xlu0 %v220
    %v222 = vpop.xlane.xlu0 %221
    %v223 = vsel %vm123, %v108, 0.0
    %224 = vadd.xlane.f32.xlu0 %v223
    %v225 = vpop.xlane.xlu0 %224
    %v226 = vsel %vm123, %v109, 0.0
    %227 = vadd.xlane.f32.xlu0 %v226
    %v228 = vpop.xlane.xlu0 %227
    %v229 = vsel %vm123, %v110, 0.0
    %230 = vadd.xlane.f32.xlu0 %v229
    %v231 = vpop.xlane.xlu0 %230
    %v232 = vsel %vm123, %v111, 0.0
    %233 = vadd.xlane.f32.xlu0 %v232
    %v234 = vpop.xlane.xlu0 %233
    %v235 = vsel %vm123, %v112, 0.0
    %236 = vadd.xlane.f32.xlu0 %v235
    %v237 = vpop.xlane.xlu0 %236
    %v238 = vsel %vm123, %v113, 0.0
    %239 = vadd.xlane.f32.xlu0 %v238
    %v240 = vpop.xlane.xlu0 %239
    %v241 = vsel %vm123, %v114, 0.0
    %242 = vadd.xlane.f32.xlu0 %v241
    %v243 = vpop.xlane.xlu0 %242
    %v244 = vsel %vm123, %v115, 0.0
    %245 = vadd.xlane.f32.xlu0 %v244
    %v246 = vpop.xlane.xlu0 %245
    %v247 = vsel %vm123, %v116, 0.0
    %248 = vadd.xlane.f32.xlu0 %v247
    %v249 = vpop.xlane.xlu0 %248
    %v250 = vsel %vm123, %v117, 0.0
    %251 = vadd.xlane.f32.xlu0 %v250
    %v252 = vpop.xlane.xlu0 %251
    %v253 = vsel %vm123, %v118, 0.0
    %254 = vadd.xlane.f32.xlu0 %v253
    %v255 = vpop.xlane.xlu0 %254
    %v256 = vsel %vm123, %v119, 0.0
    %257 = vadd.xlane.f32.xlu0 %v256
    %v258 = vpop.xlane.xlu0 %257
    %v259 = vsel %vm123, %v120, 0.0
    %260 = vadd.xlane.f32.xlu0 %v259
    %v261 = vpop.xlane.xlu0 %260
    %v262 = vsel %vm123, %v121, 0.0
    %263 = vadd.xlane.f32.xlu0 %v262
    %v264 = vpop.xlane.xlu0 %263
    %v265 = vsel %vm123, %v122, 0.0
    %266 = vadd.xlane.f32.xlu0 %v265
    %v267 = vpop.xlane.xlu0 %266
    %v268 = vstv %s74
    %v269 = vmul.f32 %v268, %v126
    %v270 = vmul.f32 %v268, %v129
    %v271 = vmul.f32 %v268, %v132
    %v272 = vmul.f32 %v268, %v135
    %v273 = vmul.f32 %v268, %v138
    %v274 = vmul.f32 %v268, %v141
    %v275 = vmul.f32 %v268, %v144
    %v276 = vmul.f32 %v268, %v147
    %v277 = vmul.f32 %v268, %v150
    %v278 = vmul.f32 %v268, %v153
    %v279 = vmul.f32 %v268, %v156
    %v280 = vmul.f32 %v268, %v159
    %v281 = vmul.f32 %v268, %v162
    %v282 = vmul.f32 %v268, %v165
    %v283 = vmul.f32 %v268, %v168
    %v284 = vmul.f32 %v268, %v171
    %v285 = vmul.f32 %v268, %v174
    %v286 = vmul.f32 %v268, %v177
    %v287 = vmul.f32 %v268, %v180
    %v288 = vmul.f32 %v268, %v183
    %v289 = vmul.f32 %v268, %v186
    %v290 = vmul.f32 %v268, %v189
    %v291 = vmul.f32 %v268, %v192
    %v292 = vmul.f32 %v268, %v195
    %v293 = vmul.f32 %v268, %v198
    %v294 = vmul.f32 %v268, %v201
    %v295 = vmul.f32 %v268, %v204
    %v296 = vmul.f32 %v268, %v207
    %v297 = vmul.f32 %v268, %v210
    %v298 = vmul.f32 %v268, %v213
    %v299 = vmul.f32 %v268, %v216
    %v300 = vmul.f32 %v268, %v219
    %v301 = vmul.f32 %v268, %v222
    %v302 = vmul.f32 %v268, %v225
    %v303 = vmul.f32 %v268, %v228
    %v304 = vmul.f32 %v268, %v231
    %v305 = vmul.f32 %v268, %v234
    %v306 = vmul.f32 %v268, %v237
    %v307 = vmul.f32 %v268, %v240
    %v308 = vmul.f32 %v268, %v243
    %v309 = vmul.f32 %v268, %v246
    %v310 = vmul.f32 %v268, %v249
    %v311 = vmul.f32 %v268, %v252
    %v312 = vmul.f32 %v268, %v255
    %v313 = vmul.f32 %v268, %v258
    %v314 = vmul.f32 %v268, %v261
    %v315 = vmul.f32 %v268, %v264
    %v316 = vmul.f32 %v268, %v267
    %v317 = vmul.f32 %v269, 1.442695
    %v318 = vpow.pop %v317
    %v319 = vmul.f32 %v270, 1.442695
    %v320 = vpow.pop %v319
    %v321 = vmul.f32 %v271, 1.442695
    %v322 = vpow.pop %v321
    %v323 = vmul.f32 %v272, 1.442695
    %v324 = vpow.pop %v323
    %v325 = vmul.f32 %v273, 1.442695
    %v326 = vpow.pop %v325
    %v327 = vmul.f32 %v274, 1.442695
    %v328 = vpow.pop %v327
    %v329 = vmul.f32 %v275, 1.442695
    %v330 = vpow.pop %v329
    %v331 = vmul.f32 %v276, 1.442695
    %v332 = vpow.pop %v331
    %v333 = vmul.f32 %v277, 1.442695
    %v334 = vpow.pop %v333
    %v335 = vmul.f32 %v278, 1.442695
    %v336 = vpow.pop %v335
    %v337 = vmul.f32 %v279, 1.442695
    %v338 = vpow.pop %v337
    %v339 = vmul.f32 %v280, 1.442695
    %v340 = vpow.pop %v339
    %v341 = vmul.f32 %v281, 1.442695
    %v342 = vpow.pop %v341
    %v343 = vmul.f32 %v282, 1.442695
    %v344 = vpow.pop %v343
    %v345 = vmul.f32 %v283, 1.442695
    %v346 = vpow.pop %v345
    %v347 = vmul.f32 %v284, 1.442695
    %v348 = vpow.pop %v347
    %v349 = vmul.f32 %v285, 1.442695
    %v350 = vpow.pop %v349
    %v351 = vmul.f32 %v286, 1.442695
    %v352 = vpow.pop %v351
    %v353 = vmul.f32 %v287, 1.442695
    %v354 = vpow.pop %v353
    %v355 = vmul.f32 %v288, 1.442695
    %v356 = vpow.pop %v355
    %v357 = vmul.f32 %v289, 1.442695
    %v358 = vpow.pop %v357
    %v359 = vmul.f32 %v290, 1.442695
    %v360 = vpow.pop %v359
    %v361 = vmul.f32 %v291, 1.442695
    %v362 = vpow.pop %v361
    %v363 = vmul.f32 %v292, 1.442695
    %v364 = vpow.pop %v363
    %v365 = vmul.f32 %v293, 1.442695
    %v366 = vpow.pop %v365
    %v367 = vmul.f32 %v294, 1.442695
    %v368 = vpow.pop %v367
    %v369 = vmul.f32 %v295, 1.442695
    %v370 = vpow.pop %v369
    %v371 = vmul.f32 %v296, 1.442695
    %v372 = vpow.pop %v371
    %v373 = vmul.f32 %v297, 1.442695
    %v374 = vpow.pop %v373
    %v375 = vmul.f32 %v298, 1.442695
    %v376 = vpow.pop %v375
    %v377 = vmul.f32 %v299, 1.442695
    %v378 = vpow.pop %v377
    %v379 = vmul.f32 %v300, 1.442695
    %v380 = vpow.pop %v379
    %v381 = vmul.f32 %v301, 1.442695
    %v382 = vpow.pop %v381
    %v383 = vmul.f32 %v302, 1.442695
    %v384 = vpow.pop %v383
    %v385 = vmul.f32 %v303, 1.442695
    %v386 = vpow.pop %v385
    %v387 = vmul.f32 %v304, 1.442695
    %v388 = vpow.pop %v387
    %v389 = vmul.f32 %v305, 1.442695
    %v390 = vpow.pop %v389
    %v391 = vmul.f32 %v306, 1.442695
    %v392 = vpow.pop %v391
    %v393 = vmul.f32 %v307, 1.442695
    %v394 = vpow.pop %v393
    %v395 = vmul.f32 %v308, 1.442695
    %v396 = vpow.pop %v395
    %v397 = vmul.f32 %v309, 1.442695
    %v398 = vpow.pop %v397
    %v399 = vmul.f32 %v310, 1.442695
    %v400 = vpow.pop %v399
    %v401 = vmul.f32 %v311, 1.442695
    %v402 = vpow.pop %v401
    %v403 = vmul.f32 %v312, 1.442695
    %v404 = vpow.pop %v403
    %v405 = vmul.f32 %v313, 1.442695
    %v406 = vpow.pop %v405
    %v407 = vmul.f32 %v314, 1.442695
    %v408 = vpow.pop %v407
    %v409 = vmul.f32 %v315, 1.442695
    %v410 = vpow.pop %v409
    %v411 = vmul.f32 %v316, 1.442695
    %v412 = vpow.pop %v411
    %v413 = vld [vmem:[%s2] sm:$0xf]
    %v414 = vld [vmem:[%s3] sm:$0x1]
    %v416 = vlaneseq
    %v417 = vshrl.u32 %v416, 7
    %v418 = vsub.s32 0, %v417
    %v419 = vrot.slane %v414, %v418
    %v422 = vsel %vm123, %v25, 0
    %v425 = vsel %vm123, %v26, 0
    %v428 = vsel %vm123, %v27, 0
    %v431 = vsel %vm123, %v28, 0
    %v434 = vsel %vm123, %v29, 0
    %v437 = vsel %vm123, %v30, 0
    %v440 = vsel %vm123, %v31, 0
    %v443 = vsel %vm123, %v32, 0
    %v446 = vsel %vm123, %v33, 0
    %v449 = vsel %vm123, %v34, 0
    %v452 = vsel %vm123, %v35, 0
    %v455 = vsel %vm123, %v36, 0
    %v458 = vsel %vm123, %v37, 0
    %v461 = vsel %vm123, %v38, 0
    %v464 = vsel %vm123, %v39, 0
    %v467 = vsel %vm123, %v40, 0
    %v470 = vsel %vm123, %v41, 0
    %v473 = vsel %vm123, %v42, 0
    %v476 = vsel %vm123, %v43, 0
    %v479 = vsel %vm123, %v44, 0
    %v482 = vsel %vm123, %v45, 0
    %v485 = vsel %vm123, %v46, 0
    %v488 = vsel %vm123, %v47, 0
    %v491 = vsel %vm123, %v48, 0
    %v494 = vsel %vm123, %v49, 0
    %v497 = vsel %vm123, %v50, 0
    %v500 = vsel %vm123, %v51, 0
    %v503 = vsel %vm123, %v52, 0
    %v506 = vsel %vm123, %v53, 0
    %v509 = vsel %vm123, %v54, 0
    %v512 = vsel %vm123, %v55, 0
    %v515 = vsel %vm123, %v56, 0
    %v518 = vsel %vm123, %v57, 0
    %v521 = vsel %vm123, %v58, 0
    %v524 = vsel %vm123, %v59, 0
    %v527 = vsel %vm123, %v60, 0
    %v530 = vsel %vm123, %v61, 0
    %v533 = vsel %vm123, %v62, 0
    %v536 = vsel %vm123, %v63, 0
    %v539 = vsel %vm123, %v64, 0
    %v542 = vsel %vm123, %v65, 0
    %v545 = vsel %vm123, %v66, 0
    %v548 = vsel %vm123, %v67, 0
    %v551 = vsel %vm123, %v68, 0
    %v554 = vsel %vm123, %v69, 0
    %v557 = vsel %vm123, %v70, 0
    %v560 = vsel %vm123, %v71, 0
    %v563 = vsel %vm123, %v72, 0
    %vm565 = vcmask 1043456
    %v567 = vsel %vm565, %v413, 0
    %569 = vmatprep.subr.mxu0 0.0
    %570 = vmatpush1.msra.mxu0 %v567
    %571 = vmatprep.subr.mxu0 0.0
    %572 = vmatpush1.msra.mxu0 0.0
    %573 = vmatprep.subr.mxu0 0.0
    %574 = vmatpush1.msra.mxu0 0.0
    %575 = vmatprep.subr.mxu0 0.0
    %576 = vmatpush1.msra.mxu0 0.0
    %577 = vmatprep.subr.mxu0 0.0
    %578 = vmatpush1.msra.mxu0 0.0
    %579 = vmatprep.subr.mxu0 0.0
    %580 = vmatpush1.msra.mxu0 0.0
    %581 = vmatprep.subr.mxu0 0.0
    %582 = vmatpush1.msra.mxu0 0.0
    %583 = vmatprep.subr.mxu0 0.0
    %584 = vmatpush1.msra.mxu0 0.0
    %585 = vmatprep.subr.mxu0 0.0
    %586 = vmatpush1.msra.mxu0 0.0
    %587 = vmatprep.subr.mxu0 0.0
    %588 = vmatpush1.msra.mxu0 0.0
    %589 = vmatprep.subr.mxu0 0.0
    %590 = vmatpush1.msra.mxu0 0.0
    %591 = vmatprep.subr.mxu0 0.0
    %592 = vmatpush1.msra.mxu0 0.0
    %593 = vmatprep.subr.mxu0 0.0
    %594 = vmatpush1.msra.mxu0 0.0
    %595 = vmatprep.subr.mxu0 0.0
    %596 = vmatpush1.msra.mxu0 0.0
    %597 = vmatprep.subr.mxu0 0.0
    %598 = vmatpush1.msra.mxu0 0.0
    %599 = vmatprep.subr.mxu0 0.0
    %600 = vmatpush1.msra.mxu0 0.0
    %601 = vmatprep.subr.mxu0 0.0
    %602 = vmatpush1.msra.mxu0 0.0
    %603 = vmatprep.subr.mxu0 0.0
    %604 = vmatpush1.msra.mxu0 0.0
    %605 = vmatprep.subr.mxu0 0.0
    %606 = vmatpush1.msra.mxu0 0.0
    %607 = vmatprep.subr.mxu0 0.0
    %608 = vmatpush1.msra.mxu0 0.0
    %609 = vmatprep.subr.mxu0 0.0
    %610 = vmatpush1.msra.mxu0 0.0
    %611 = vmatprep.subr.mxu0 0.0
    %612 = vmatpush1.msra.mxu0 0.0
    %613 = vmatprep.subr.mxu0 0.0
    %614 = vmatpush1.msra.mxu0 0.0
    %615 = vmatprep.subr.mxu0 0.0
    %616 = vmatpush1.msra.mxu0 0.0
    %617 = vmatprep.subr.mxu0 0.0
    %618 = vmatpush1.msra.mxu0 0.0
    %619 = vmatprep.subr.mxu0 0.0
    %620 = vmatpush1.msra.mxu0 0.0
    %621 = vmatprep.subr.mxu0 0.0
    %622 = vmatpush1.msra.mxu0 0.0
    %623 = vmatprep.subr.mxu0 0.0
    %624 = vmatpush1.msra.mxu0 0.0
    %625 = vmatprep.subr.mxu0 0.0
    %626 = vmatpush1.msra.mxu0 0.0
    %627 = vmatprep.subr.mxu0 0.0
    %628 = vmatpush1.msra.mxu0 0.0
    %629 = vmatprep.subr.mxu0 0.0
    %630 = vmatpush1.msra.mxu0 0.0
    %631 = vmatprep.subr.mxu0 0.0
    %632 = vmatpush1.msra.mxu0 0.0
    %633 = vmatprep.mubr.f32.mxu0 0.0
    %634 = vmatmul.mubr.f32.gmra.mrb[0].mxu0 %v422
    %v635 = vpop.f32.mrb[0].mxu0
    %v636 = vadd.f32 %v419, %v635
    %v637 = vpop.f32.mrb[0].mxu0
    %638 = vmatprep.mubr.f32.mxu0 0.0
    %639 = vmatmul.mubr.f32.gmra.mrb[0].mxu0 %v425
    %v640 = vpop.f32.mrb[0].mxu0
    %v641 = vadd.f32 %v419, %v640
    %v642 = vpop.f32.mrb[0].mxu0
    %643 = vmatprep.mubr.f32.mxu0 0.0
    %644 = vmatmul.mubr.f32.gmra.mrb[0].mxu0 %v428
    %v645 = vpop.f32.mrb[0].mxu0
    %v646 = vadd.f32 %v419, %v645
    %v647 = vpop.f32.mrb[0].mxu0
    %648 = vmatprep.mubr.f32.mxu0 0.0
    %649 = vmatmul.mubr.f32.gmra.mrb[0].mxu0 %v431
    %v650 = vpop.f32.mrb[0].mxu0
    %v651 = vadd.f32 %v419, %v650
    %v652 = vpop.f32.mrb[0].mxu0
    %653 = vmatprep.mubr.f32.mxu0 0.0
    %654 = vmatmul.mubr.f32.gmra.mrb[0].mxu0 %v434
    %v655 = vpop.f32.mrb[0].mxu0
    %v656 = vadd.f32 %v419, %v655
    %v657 = vpop.f32.mrb[0].mxu0
    %658 = vmatprep.mubr.f32.mxu0 0.0
    %659 = vmatmul.mubr.f32.gmra.mrb[0].mxu0 %v437
    %v660 = vpop.f32.mrb[0].mxu0
    %v661 = vadd.f32 %v419, %v660
    %v662 = vpop.f32.mrb[0].mxu0
    %663 = vmatprep.mubr.f32.mxu0 0.0
    %664 = vmatmul.mubr.f32.gmra.mrb[0].mxu0 %v440
    %v665 = vpop.f32.mrb[0].mxu0
    %v666 = vadd.f32 %v419, %v665
    %v667 = vpop.f32.mrb[0].mxu0
    %668 = vmatprep.mubr.f32.mxu0 0.0
    %669 = vmatmul.mubr.f32.gmra.mrb[0].mxu0 %v443
    %v670 = vpop.f32.mrb[0].mxu0
    %v671 = vadd.f32 %v419, %v670
    %v672 = vpop.f32.mrb[0].mxu0
    %673 = vmatprep.mubr.f32.mxu0 0.0
    %674 = vmatmul.mubr.f32.gmra.mrb[0].mxu0 %v446
    %v675 = vpop.f32.mrb[0].mxu0
    %v676 = vadd.f32 %v419, %v675
    %v677 = vpop.f32.mrb[0].mxu0
    %678 = vmatprep.mubr.f32.mxu0 0.0
    %679 = vmatmul.mubr.f32.gmra.mrb[0].mxu0 %v449
    %v680 = vpop.f32.mrb[0].mxu0
    %v681 = vadd.f32 %v419, %v680
    %v682 = vpop.f32.mrb[0].mxu0
    %683 = vmatprep.mubr.f32.mxu0 0.0
    %684 = vmatmul.mubr.f32.gmra.mrb[0].mxu0 %v452
    %v685 = vpop.f32.mrb[0].mxu0
    %v686 = vadd.f32 %v419, %v685
    %v687 = vpop.f32.mrb[0].mxu0
    %688 = vmatprep.mubr.f32.mxu0 0.0
    %689 = vmatmul.mubr.f32.gmra.mrb[0].mxu0 %v455
    %v690 = vpop.f32.mrb[0].mxu0
    %v691 = vadd.f32 %v419, %v690
    %v692 = vpop.f32.mrb[0].mxu0
    %693 = vmatprep.mubr.f32.mxu0 0.0
    %694 = vmatmul.mubr.f32.gmra.mrb[0].mxu0 %v458
    %v695 = vpop.f32.mrb[0].mxu0
    %v696 = vadd.f32 %v419, %v695
    %v697 = vpop.f32.mrb[0].mxu0
    %698 = vmatprep.mubr.f32.mxu0 0.0
    %699 = vmatmul.mubr.f32.gmra.mrb[0].mxu0 %v461
    %v700 = vpop.f32.mrb[0].mxu0
    %v701 = vadd.f32 %v419, %v700
    %v702 = vpop.f32.mrb[0].mxu0
    %703 = vmatprep.mubr.f32.mxu0 0.0
    %704 = vmatmul.mubr.f32.gmra.mrb[0].mxu0 %v464
    %v705 = vpop.f32.mrb[0].mxu0
    %v706 = vadd.f32 %v419, %v705
    %v707 = vpop.f32.mrb[0].mxu0
    %708 = vmatprep.mubr.f32.mxu0 0.0
    %709 = vmatmul.mubr.f32.gmra.mrb[0].mxu0 %v467
    %v710 = vpop.f32.mrb[0].mxu0
    %v711 = vadd.f32 %v419, %v710
    %v712 = vpop.f32.mrb[0].mxu0
    %713 = vmatprep.mubr.f32.mxu0 0.0
    %714 = vmatmul.mubr.f32.gmra.mrb[0].mxu0 %v470
    %v715 = vpop.f32.mrb[0].mxu0
    %v716 = vadd.f32 %v419, %v715
    %v717 = vpop.f32.mrb[0].mxu0
    %718 = vmatprep.mubr.f32.mxu0 0.0
    %719 = vmatmul.mubr.f32.gmra.mrb[0].mxu0 %v473
    %v720 = vpop.f32.mrb[0].mxu0
    %v721 = vadd.f32 %v419, %v720
    %v722 = vpop.f32.mrb[0].mxu0
    %723 = vmatprep.mubr.f32.mxu0 0.0
    %724 = vmatmul.mubr.f32.gmra.mrb[0].mxu0 %v476
    %v725 = vpop.f32.mrb[0].mxu0
    %v726 = vadd.f32 %v419, %v725
    %v727 = vpop.f32.mrb[0].mxu0
    %728 = vmatprep.mubr.f32.mxu0 0.0
    %729 = vmatmul.mubr.f32.gmra.mrb[0].mxu0 %v479
    %v730 = vpop.f32.mrb[0].mxu0
    %v731 = vadd.f32 %v419, %v730
    %v732 = vpop.f32.mrb[0].mxu0
    %733 = vmatprep.mubr.f32.mxu0 0.0
    %734 = vmatmul.mubr.f32.gmra.mrb[0].mxu0 %v482
    %v735 = vpop.f32.mrb[0].mxu0
    %v736 = vadd.f32 %v419, %v735
    %v737 = vpop.f32.mrb[0].mxu0
    %738 = vmatprep.mubr.f32.mxu0 0.0
    %739 = vmatmul.mubr.f32.gmra.mrb[0].mxu0 %v485
    %v740 = vpop.f32.mrb[0].mxu0
    %v741 = vadd.f32 %v419, %v740
    %v742 = vpop.f32.mrb[0].mxu0
    %743 = vmatprep.mubr.f32.mxu0 0.0
    %744 = vmatmul.mubr.f32.gmra.mrb[0].mxu0 %v488
    %v745 = vpop.f32.mrb[0].mxu0
    %v746 = vadd.f32 %v419, %v745
    %v747 = vpop.f32.mrb[0].mxu0
    %748 = vmatprep.mubr.f32.mxu0 0.0
    %749 = vmatmul.mubr.f32.gmra.mrb[0].mxu0 %v491
    %v750 = vpop.f32.mrb[0].mxu0
    %v751 = vadd.f32 %v419, %v750
    %v752 = vpop.f32.mrb[0].mxu0
    %753 = vmatprep.mubr.f32.mxu0 0.0
    %754 = vmatmul.mubr.f32.gmra.mrb[0].mxu0 %v494
    %v755 = vpop.f32.mrb[0].mxu0
    %v756 = vadd.f32 %v419, %v755
    %v757 = vpop.f32.mrb[0].mxu0
    %758 = vmatprep.mubr.f32.mxu0 0.0
    %759 = vmatmul.mubr.f32.gmra.mrb[0].mxu0 %v497
    %v760 = vpop.f32.mrb[0].mxu0
    %v761 = vadd.f32 %v419, %v760
    %v762 = vpop.f32.mrb[0].mxu0
    %763 = vmatprep.mubr.f32.mxu0 0.0
    %764 = vmatmul.mubr.f32.gmra.mrb[0].mxu0 %v500
    %v765 = vpop.f32.mrb[0].mxu0
    %v766 = vadd.f32 %v419, %v765
    %v767 = vpop.f32.mrb[0].mxu0
    %768 = vmatprep.mubr.f32.mxu0 0.0
    %769 = vmatmul.mubr.f32.gmra.mrb[0].mxu0 %v503
    %v770 = vpop.f32.mrb[0].mxu0
    %v771 = vadd.f32 %v419, %v770
    %v772 = vpop.f32.mrb[0].mxu0
    %773 = vmatprep.mubr.f32.mxu0 0.0
    %774 = vmatmul.mubr.f32.gmra.mrb[0].mxu0 %v506
    %v775 = vpop.f32.mrb[0].mxu0
    %v776 = vadd.f32 %v419, %v775
    %v777 = vpop.f32.mrb[0].mxu0
    %778 = vmatprep.mubr.f32.mxu0 0.0
    %779 = vmatmul.mubr.f32.gmra.mrb[0].mxu0 %v509
    %v780 = vpop.f32.mrb[0].mxu0
    %v781 = vadd.f32 %v419, %v780
    %v782 = vpop.f32.mrb[0].mxu0
    %783 = vmatprep.mubr.f32.mxu0 0.0
    %784 = vmatmul.mubr.f32.gmra.mrb[0].mxu0 %v512
    %v785 = vpop.f32.mrb[0].mxu0
    %v786 = vadd.f32 %v419, %v785
    %v787 = vpop.f32.mrb[0].mxu0
    %788 = vmatprep.mubr.f32.mxu0 0.0
    %789 = vmatmul.mubr.f32.gmra.mrb[0].mxu0 %v515
    %v790 = vpop.f32.mrb[0].mxu0
    %v791 = vadd.f32 %v419, %v790
    %v792 = vpop.f32.mrb[0].mxu0
    %793 = vmatprep.mubr.f32.mxu0 0.0
    %794 = vmatmul.mubr.f32.gmra.mrb[0].mxu0 %v518
    %v795 = vpop.f32.mrb[0].mxu0
    %v796 = vadd.f32 %v419, %v795
    %v797 = vpop.f32.mrb[0].mxu0
    %798 = vmatprep.mubr.f32.mxu0 0.0
    %799 = vmatmul.mubr.f32.gmra.mrb[0].mxu0 %v521
    %v800 = vpop.f32.mrb[0].mxu0
    %v801 = vadd.f32 %v419, %v800
    %v802 = vpop.f32.mrb[0].mxu0
    %803 = vmatprep.mubr.f32.mxu0 0.0
    %804 = vmatmul.mubr.f32.gmra.mrb[0].mxu0 %v524
    %v805 = vpop.f32.mrb[0].mxu0
    %v806 = vadd.f32 %v419, %v805
    %v807 = vpop.f32.mrb[0].mxu0
    %808 = vmatprep.mubr.f32.mxu0 0.0
    %809 = vmatmul.mubr.f32.gmra.mrb[0].mxu0 %v527
    %v810 = vpop.f32.mrb[0].mxu0
    %v811 = vadd.f32 %v419, %v810
    %v812 = vpop.f32.mrb[0].mxu0
    %813 = vmatprep.mubr.f32.mxu0 0.0
    %814 = vmatmul.mubr.f32.gmra.mrb[0].mxu0 %v530
    %v815 = vpop.f32.mrb[0].mxu0
    %v816 = vadd.f32 %v419, %v815
    %v817 = vpop.f32.mrb[0].mxu0
    %818 = vmatprep.mubr.f32.mxu0 0.0
    %819 = vmatmul.mubr.f32.gmra.mrb[0].mxu0 %v533
    %v820 = vpop.f32.mrb[0].mxu0
    %v821 = vadd.f32 %v419, %v820
    %v822 = vpop.f32.mrb[0].mxu0
    %823 = vmatprep.mubr.f32.mxu0 0.0
    %824 = vmatmul.mubr.f32.gmra.mrb[0].mxu0 %v536
    %v825 = vpop.f32.mrb[0].mxu0
    %v826 = vadd.f32 %v419, %v825
    %v827 = vpop.f32.mrb[0].mxu0
    %828 = vmatprep.mubr.f32.mxu0 0.0
    %829 = vmatmul.mubr.f32.gmra.mrb[0].mxu0 %v539
    %v830 = vpop.f32.mrb[0].mxu0
    %v831 = vadd.f32 %v419, %v830
    %v832 = vpop.f32.mrb[0].mxu0
    %833 = vmatprep.mubr.f32.mxu0 0.0
    %834 = vmatmul.mubr.f32.gmra.mrb[0].mxu0 %v542
    %v835 = vpop.f32.mrb[0].mxu0
    %v836 = vadd.f32 %v419, %v835
    %v837 = vpop.f32.mrb[0].mxu0
    %838 = vmatprep.mubr.f32.mxu0 0.0
    %839 = vmatmul.mubr.f32.gmra.mrb[0].mxu0 %v545
    %v840 = vpop.f32.mrb[0].mxu0
    %v841 = vadd.f32 %v419, %v840
    %v842 = vpop.f32.mrb[0].mxu0
    %843 = vmatprep.mubr.f32.mxu0 0.0
    %844 = vmatmul.mubr.f32.gmra.mrb[0].mxu0 %v548
    %v845 = vpop.f32.mrb[0].mxu0
    %v846 = vadd.f32 %v419, %v845
    %v847 = vpop.f32.mrb[0].mxu0
    %848 = vmatprep.mubr.f32.mxu0 0.0
    %849 = vmatmul.mubr.f32.gmra.mrb[0].mxu0 %v551
    %v850 = vpop.f32.mrb[0].mxu0
    %v851 = vadd.f32 %v419, %v850
    %v852 = vpop.f32.mrb[0].mxu0
    %853 = vmatprep.mubr.f32.mxu0 0.0
    %854 = vmatmul.mubr.f32.gmra.mrb[0].mxu0 %v554
    %v855 = vpop.f32.mrb[0].mxu0
    %v856 = vadd.f32 %v419, %v855
    %v857 = vpop.f32.mrb[0].mxu0
    %858 = vmatprep.mubr.f32.mxu0 0.0
    %859 = vmatmul.mubr.f32.gmra.mrb[0].mxu0 %v557
    %v860 = vpop.f32.mrb[0].mxu0
    %v861 = vadd.f32 %v419, %v860
    %v862 = vpop.f32.mrb[0].mxu0
    %863 = vmatprep.mubr.f32.mxu0 0.0
    %864 = vmatmul.mubr.f32.gmra.mrb[0].mxu0 %v560
    %v865 = vpop.f32.mrb[0].mxu0
    %v866 = vadd.f32 %v419, %v865
    %v867 = vpop.f32.mrb[0].mxu0
    %868 = vmatprep.mubr.f32.mxu0 0.0
    %869 = vmatmul.mubr.f32.gmra.mrb[0].mxu0 %v563
    %v870 = vpop.f32.mrb[0].mxu0
    %v871 = vadd.f32 %v419, %v870
    %v872 = vpop.f32.mrb[0].mxu0
    %873 = vdwg.mxu0
    %v874 = vtanh.pop %v636
    %v875 = vtanh.pop %v641
    %v876 = vtanh.pop %v646
    %v877 = vtanh.pop %v651
    %v878 = vtanh.pop %v656
    %v879 = vtanh.pop %v661
    %v880 = vtanh.pop %v666
    %v881 = vtanh.pop %v671
    %v882 = vtanh.pop %v676
    %v883 = vtanh.pop %v681
    %v884 = vtanh.pop %v686
    %v885 = vtanh.pop %v691
    %v886 = vtanh.pop %v696
    %v887 = vtanh.pop %v701
    %v888 = vtanh.pop %v706
    %v889 = vtanh.pop %v711
    %v890 = vtanh.pop %v716
    %v891 = vtanh.pop %v721
    %v892 = vtanh.pop %v726
    %v893 = vtanh.pop %v731
    %v894 = vtanh.pop %v736
    %v895 = vtanh.pop %v741
    %v896 = vtanh.pop %v746
    %v897 = vtanh.pop %v751
    %v898 = vtanh.pop %v756
    %v899 = vtanh.pop %v761
    %v900 = vtanh.pop %v766
    %v901 = vtanh.pop %v771
    %v902 = vtanh.pop %v776
    %v903 = vtanh.pop %v781
    %v904 = vtanh.pop %v786
    %v905 = vtanh.pop %v791
    %v906 = vtanh.pop %v796
    %v907 = vtanh.pop %v801
    %v908 = vtanh.pop %v806
    %v909 = vtanh.pop %v811
    %v910 = vtanh.pop %v816
    %v911 = vtanh.pop %v821
    %v912 = vtanh.pop %v826
    %v913 = vtanh.pop %v831
    %v914 = vtanh.pop %v836
    %v915 = vtanh.pop %v841
    %v916 = vtanh.pop %v846
    %v917 = vtanh.pop %v851
    %v918 = vtanh.pop %v856
    %v919 = vtanh.pop %v861
    %v920 = vtanh.pop %v866
    %v921 = vtanh.pop %v871
    %v922 = vld [vmem:[%s4] sm:$0xff]
    %v923 = vld [vmem:[%s4 + $0x8] sm:$0xff]
    %v924 = vld [vmem:[%s4 + $0x10] sm:$0xff]
    %v925 = vld [vmem:[%s4 + $0x18] sm:$0xff]
    %v926 = vld [vmem:[%s4 + $0x20] sm:$0xff]
    %v927 = vld [vmem:[%s4 + $0x28] sm:$0xff]
    %v928 = vld [vmem:[%s4 + $0x30] sm:$0xff]
    %v929 = vld [vmem:[%s4 + $0x38] sm:$0xff]
    %v930 = vld [vmem:[%s4 + $0x40] sm:$0xff]
    %v931 = vld [vmem:[%s4 + $0x48] sm:$0xff]
    %v932 = vld [vmem:[%s4 + $0x50] sm:$0xff]
    %v933 = vld [vmem:[%s4 + $0x58] sm:$0xff]
    %v934 = vld [vmem:[%s4 + $0x60] sm:$0xff]
    %v935 = vld [vmem:[%s4 + $0x68] sm:$0xff]
    %v936 = vld [vmem:[%s4 + $0x70] sm:$0xff]
    %v937 = vld [vmem:[%s4 + $0x78] sm:$0xff]
    %v938 = vld [vmem:[%s5] sm:$0x1]
    %v940 = vlaneseq
    %v941 = vshrl.u32 %v940, 7
    %v942 = vsub.s32 0, %v941
    %v943 = vrot.slane %v938, %v942
    %945 = vmatprep.subr.mxu0 0.0
    %946 = vmatpush1.msra.mxu0 %v922
    %947 = vmatprep.subr.mxu0 0.0
    %948 = vmatpush1.msra.mxu0 %v923
    %949 = vmatprep.subr.mxu0 0.0
    %950 = vmatpush1.msra.mxu0 %v924
    %951 = vmatprep.subr.mxu0 0.0
    %952 = vmatpush1.msra.mxu0 %v925
    %953 = vmatprep.subr.mxu0 0.0
    %954 = vmatpush1.msra.mxu0 %v926
    %955 = vmatprep.subr.mxu0 0.0
    %956 = vmatpush1.msra.mxu0 %v927
    %957 = vmatprep.subr.mxu0 0.0
    %958 = vmatpush1.msra.mxu0 %v928
    %959 = vmatprep.subr.mxu0 0.0
    %960 = vmatpush1.msra.mxu0 %v929
    %961 = vmatprep.subr.mxu0 0.0
    %962 = vmatpush1.msra.mxu0 %v930
    %963 = vmatprep.subr.mxu0 0.0
    %964 = vmatpush1.msra.mxu0 %v931
    %965 = vmatprep.subr.mxu0 0.0
    %966 = vmatpush1.msra.mxu0 %v932
    %967 = vmatprep.subr.mxu0 0.0
    %968 = vmatpush1.msra.mxu0 %v933
    %969 = vmatprep.subr.mxu0 0.0
    %970 = vmatpush1.msra.mxu0 %v934
    %971 = vmatprep.subr.mxu0 0.0
    %972 = vmatpush1.msra.mxu0 %v935
    %973 = vmatprep.subr.mxu0 0.0
    %974 = vmatpush1.msra.mxu0 %v936
    %975 = vmatprep.subr.mxu0 0.0
    %976 = vmatpush1.msra.mxu0 %v937
    %977 = vmatprep.subr.mxu0 0.0
    %978 = vmatpush1.msra.mxu0 0.0
    %979 = vmatprep.subr.mxu0 0.0
    %980 = vmatpush1.msra.mxu0 0.0
    %981 = vmatprep.subr.mxu0 0.0
    %982 = vmatpush1.msra.mxu0 0.0
    %983 = vmatprep.subr.mxu0 0.0
    %984 = vmatpush1.msra.mxu0 0.0
    %985 = vmatprep.subr.mxu0 0.0
    %986 = vmatpush1.msra.mxu0 0.0
    %987 = vmatprep.subr.mxu0 0.0
    %988 = vmatpush1.msra.mxu0 0.0
    %989 = vmatprep.subr.mxu0 0.0
    %990 = vmatpush1.msra.mxu0 0.0
    %991 = vmatprep.subr.mxu0 0.0
    %992 = vmatpush1.msra.mxu0 0.0
    %993 = vmatprep.subr.mxu0 0.0
    %994 = vmatpush1.msra.mxu0 0.0
    %995 = vmatprep.subr.mxu0 0.0
    %996 = vmatpush1.msra.mxu0 0.0
    %997 = vmatprep.subr.mxu0 0.0
    %998 = vmatpush1.msra.mxu0 0.0
    %999 = vmatprep.subr.mxu0 0.0
    %1000 = vmatpush1.msra.mxu0 0.0
    %1001 = vmatprep.subr.mxu0 0.0
    %1002 = vmatpush1.msra.mxu0 0.0
    %1003 = vmatprep.subr.mxu0 0.0
    %1004 = vmatpush1.msra.mxu0 0.0
    %1005 = vmatprep.subr.mxu0 0.0
    %1006 = vmatpush1.msra.mxu0 0.0
    %1007 = vmatprep.subr.mxu0 0.0
    %1008 = vmatpush1.msra.mxu0 0.0
    %1009 = vmatprep.mubr.f32.mxu0 0.0
    %1010 = vmatmul.mubr.f32.gmra.mrb[0].mxu0 %v874
    %v1011 = vpop.f32.mrb[0].mxu0
    %v1012 = vadd.f32 %v943, %v1011
    %v1013 = vpop.f32.mrb[0].mxu0
    %1014 = vmatprep.mubr.f32.mxu0 0.0
    %1015 = vmatmul.mubr.f32.gmra.mrb[0].mxu0 %v875
    %v1016 = vpop.f32.mrb[0].mxu0
    %v1017 = vadd.f32 %v943, %v1016
    %v1018 = vpop.f32.mrb[0].mxu0
    %1019 = vmatprep.mubr.f32.mxu0 0.0
    %1020 = vmatmul.mubr.f32.gmra.mrb[0].mxu0 %v876
    %v1021 = vpop.f32.mrb[0].mxu0
    %v1022 = vadd.f32 %v943, %v1021
    %v1023 = vpop.f32.mrb[0].mxu0
    %1024 = vmatprep.mubr.f32.mxu0 0.0
    %1025 = vmatmul.mubr.f32.gmra.mrb[0].mxu0 %v877
    %v1026 = vpop.f32.mrb[0].mxu0
    %v1027 = vadd.f32 %v943, %v1026
    %v1028 = vpop.f32.mrb[0].mxu0
    %1029 = vmatprep.mubr.f32.mxu0 0.0
    %1030 = vmatmul.mubr.f32.gmra.mrb[0].mxu0 %v878
    %v1031 = vpop.f32.mrb[0].mxu0
    %v1032 = vadd.f32 %v943, %v1031
    %v1033 = vpop.f32.mrb[0].mxu0
    %1034 = vmatprep.mubr.f32.mxu0 0.0
    %1035 = vmatmul.mubr.f32.gmra.mrb[0].mxu0 %v879
    %v1036 = vpop.f32.mrb[0].mxu0
    %v1037 = vadd.f32 %v943, %v1036
    %v1038 = vpop.f32.mrb[0].mxu0
    %1039 = vmatprep.mubr.f32.mxu0 0.0
    %1040 = vmatmul.mubr.f32.gmra.mrb[0].mxu0 %v880
    %v1041 = vpop.f32.mrb[0].mxu0
    %v1042 = vadd.f32 %v943, %v1041
    %v1043 = vpop.f32.mrb[0].mxu0
    %1044 = vmatprep.mubr.f32.mxu0 0.0
    %1045 = vmatmul.mubr.f32.gmra.mrb[0].mxu0 %v881
    %v1046 = vpop.f32.mrb[0].mxu0
    %v1047 = vadd.f32 %v943, %v1046
    %v1048 = vpop.f32.mrb[0].mxu0
    %1049 = vmatprep.mubr.f32.mxu0 0.0
    %1050 = vmatmul.mubr.f32.gmra.mrb[0].mxu0 %v882
    %v1051 = vpop.f32.mrb[0].mxu0
    %v1052 = vadd.f32 %v943, %v1051
    %v1053 = vpop.f32.mrb[0].mxu0
    %1054 = vmatprep.mubr.f32.mxu0 0.0
    %1055 = vmatmul.mubr.f32.gmra.mrb[0].mxu0 %v883
    %v1056 = vpop.f32.mrb[0].mxu0
    %v1057 = vadd.f32 %v943, %v1056
    %v1058 = vpop.f32.mrb[0].mxu0
    %1059 = vmatprep.mubr.f32.mxu0 0.0
    %1060 = vmatmul.mubr.f32.gmra.mrb[0].mxu0 %v884
    %v1061 = vpop.f32.mrb[0].mxu0
    %v1062 = vadd.f32 %v943, %v1061
    %v1063 = vpop.f32.mrb[0].mxu0
    %1064 = vmatprep.mubr.f32.mxu0 0.0
    %1065 = vmatmul.mubr.f32.gmra.mrb[0].mxu0 %v885
    %v1066 = vpop.f32.mrb[0].mxu0
    %v1067 = vadd.f32 %v943, %v1066
    %v1068 = vpop.f32.mrb[0].mxu0
    %1069 = vmatprep.mubr.f32.mxu0 0.0
    %1070 = vmatmul.mubr.f32.gmra.mrb[0].mxu0 %v886
    %v1071 = vpop.f32.mrb[0].mxu0
    %v1072 = vadd.f32 %v943, %v1071
    %v1073 = vpop.f32.mrb[0].mxu0
    %1074 = vmatprep.mubr.f32.mxu0 0.0
    %1075 = vmatmul.mubr.f32.gmra.mrb[0].mxu0 %v887
    %v1076 = vpop.f32.mrb[0].mxu0
    %v1077 = vadd.f32 %v943, %v1076
    %v1078 = vpop.f32.mrb[0].mxu0
    %1079 = vmatprep.mubr.f32.mxu0 0.0
    %1080 = vmatmul.mubr.f32.gmra.mrb[0].mxu0 %v888
    %v1081 = vpop.f32.mrb[0].mxu0
    %v1082 = vadd.f32 %v943, %v1081
    %v1083 = vpop.f32.mrb[0].mxu0
    %1084 = vmatprep.mubr.f32.mxu0 0.0
    %1085 = vmatmul.mubr.f32.gmra.mrb[0].mxu0 %v889
    %v1086 = vpop.f32.mrb[0].mxu0
    %v1087 = vadd.f32 %v943, %v1086
    %v1088 = vpop.f32.mrb[0].mxu0
    %1089 = vmatprep.mubr.f32.mxu0 0.0
    %1090 = vmatmul.mubr.f32.gmra.mrb[0].mxu0 %v890
    %v1091 = vpop.f32.mrb[0].mxu0
    %v1092 = vadd.f32 %v943, %v1091
    %v1093 = vpop.f32.mrb[0].mxu0
    %1094 = vmatprep.mubr.f32.mxu0 0.0
    %1095 = vmatmul.mubr.f32.gmra.mrb[0].mxu0 %v891
    %v1096 = vpop.f32.mrb[0].mxu0
    %v1097 = vadd.f32 %v943, %v1096
    %v1098 = vpop.f32.mrb[0].mxu0
    %1099 = vmatprep.mubr.f32.mxu0 0.0
    %1100 = vmatmul.mubr.f32.gmra.mrb[0].mxu0 %v892
    %v1101 = vpop.f32.mrb[0].mxu0
    %v1102 = vadd.f32 %v943, %v1101
    %v1103 = vpop.f32.mrb[0].mxu0
    %1104 = vmatprep.mubr.f32.mxu0 0.0
    %1105 = vmatmul.mubr.f32.gmra.mrb[0].mxu0 %v893
    %v1106 = vpop.f32.mrb[0].mxu0
    %v1107 = vadd.f32 %v943, %v1106
    %v1108 = vpop.f32.mrb[0].mxu0
    %1109 = vmatprep.mubr.f32.mxu0 0.0
    %1110 = vmatmul.mubr.f32.gmra.mrb[0].mxu0 %v894
    %v1111 = vpop.f32.mrb[0].mxu0
    %v1112 = vadd.f32 %v943, %v1111
    %v1113 = vpop.f32.mrb[0].mxu0
    %1114 = vmatprep.mubr.f32.mxu0 0.0
    %1115 = vmatmul.mubr.f32.gmra.mrb[0].mxu0 %v895
    %v1116 = vpop.f32.mrb[0].mxu0
    %v1117 = vadd.f32 %v943, %v1116
    %v1118 = vpop.f32.mrb[0].mxu0
    %1119 = vmatprep.mubr.f32.mxu0 0.0
    %1120 = vmatmul.mubr.f32.gmra.mrb[0].mxu0 %v896
    %v1121 = vpop.f32.mrb[0].mxu0
    %v1122 = vadd.f32 %v943, %v1121
    %v1123 = vpop.f32.mrb[0].mxu0
    %1124 = vmatprep.mubr.f32.mxu0 0.0
    %1125 = vmatmul.mubr.f32.gmra.mrb[0].mxu0 %v897
    %v1126 = vpop.f32.mrb[0].mxu0
    %v1127 = vadd.f32 %v943, %v1126
    %v1128 = vpop.f32.mrb[0].mxu0
    %1129 = vmatprep.mubr.f32.mxu0 0.0
    %1130 = vmatmul.mubr.f32.gmra.mrb[0].mxu0 %v898
    %v1131 = vpop.f32.mrb[0].mxu0
    %v1132 = vadd.f32 %v943, %v1131
    %v1133 = vpop.f32.mrb[0].mxu0
    %1134 = vmatprep.mubr.f32.mxu0 0.0
    %1135 = vmatmul.mubr.f32.gmra.mrb[0].mxu0 %v899
    %v1136 = vpop.f32.mrb[0].mxu0
    %v1137 = vadd.f32 %v943, %v1136
    %v1138 = vpop.f32.mrb[0].mxu0
    %1139 = vmatprep.mubr.f32.mxu0 0.0
    %1140 = vmatmul.mubr.f32.gmra.mrb[0].mxu0 %v900
    %v1141 = vpop.f32.mrb[0].mxu0
    %v1142 = vadd.f32 %v943, %v1141
    %v1143 = vpop.f32.mrb[0].mxu0
    %1144 = vmatprep.mubr.f32.mxu0 0.0
    %1145 = vmatmul.mubr.f32.gmra.mrb[0].mxu0 %v901
    %v1146 = vpop.f32.mrb[0].mxu0
    %v1147 = vadd.f32 %v943, %v1146
    %v1148 = vpop.f32.mrb[0].mxu0
    %1149 = vmatprep.mubr.f32.mxu0 0.0
    %1150 = vmatmul.mubr.f32.gmra.mrb[0].mxu0 %v902
    %v1151 = vpop.f32.mrb[0].mxu0
    %v1152 = vadd.f32 %v943, %v1151
    %v1153 = vpop.f32.mrb[0].mxu0
    %1154 = vmatprep.mubr.f32.mxu0 0.0
    %1155 = vmatmul.mubr.f32.gmra.mrb[0].mxu0 %v903
    %v1156 = vpop.f32.mrb[0].mxu0
    %v1157 = vadd.f32 %v943, %v1156
    %v1158 = vpop.f32.mrb[0].mxu0
    %1159 = vmatprep.mubr.f32.mxu0 0.0
    %1160 = vmatmul.mubr.f32.gmra.mrb[0].mxu0 %v904
    %v1161 = vpop.f32.mrb[0].mxu0
    %v1162 = vadd.f32 %v943, %v1161
    %v1163 = vpop.f32.mrb[0].mxu0
    %1164 = vmatprep.mubr.f32.mxu0 0.0
    %1165 = vmatmul.mubr.f32.gmra.mrb[0].mxu0 %v905
    %v1166 = vpop.f32.mrb[0].mxu0
    %v1167 = vadd.f32 %v943, %v1166
    %v1168 = vpop.f32.mrb[0].mxu0
    %1169 = vmatprep.mubr.f32.mxu0 0.0
    %1170 = vmatmul.mubr.f32.gmra.mrb[0].mxu0 %v906
    %v1171 = vpop.f32.mrb[0].mxu0
    %v1172 = vadd.f32 %v943, %v1171
    %v1173 = vpop.f32.mrb[0].mxu0
    %1174 = vmatprep.mubr.f32.mxu0 0.0
    %1175 = vmatmul.mubr.f32.gmra.mrb[0].mxu0 %v907
    %v1176 = vpop.f32.mrb[0].mxu0
    %v1177 = vadd.f32 %v943, %v1176
    %v1178 = vpop.f32.mrb[0].mxu0
    %1179 = vmatprep.mubr.f32.mxu0 0.0
    %1180 = vmatmul.mubr.f32.gmra.mrb[0].mxu0 %v908
    %v1181 = vpop.f32.mrb[0].mxu0
    %v1182 = vadd.f32 %v943, %v1181
    %v1183 = vpop.f32.mrb[0].mxu0
    %1184 = vmatprep.mubr.f32.mxu0 0.0
    %1185 = vmatmul.mubr.f32.gmra.mrb[0].mxu0 %v909
    %v1186 = vpop.f32.mrb[0].mxu0
    %v1187 = vadd.f32 %v943, %v1186
    %v1188 = vpop.f32.mrb[0].mxu0
    %1189 = vmatprep.mubr.f32.mxu0 0.0
    %1190 = vmatmul.mubr.f32.gmra.mrb[0].mxu0 %v910
    %v1191 = vpop.f32.mrb[0].mxu0
    %v1192 = vadd.f32 %v943, %v1191
    %v1193 = vpop.f32.mrb[0].mxu0
    %1194 = vmatprep.mubr.f32.mxu0 0.0
    %1195 = vmatmul.mubr.f32.gmra.mrb[0].mxu0 %v911
    %v1196 = vpop.f32.mrb[0].mxu0
    %v1197 = vadd.f32 %v943, %v1196
    %v1198 = vpop.f32.mrb[0].mxu0
    %1199 = vmatprep.mubr.f32.mxu0 0.0
    %1200 = vmatmul.mubr.f32.gmra.mrb[0].mxu0 %v912
    %v1201 = vpop.f32.mrb[0].mxu0
    %v1202 = vadd.f32 %v943, %v1201
    %v1203 = vpop.f32.mrb[0].mxu0
    %1204 = vmatprep.mubr.f32.mxu0 0.0
    %1205 = vmatmul.mubr.f32.gmra.mrb[0].mxu0 %v913
    %v1206 = vpop.f32.mrb[0].mxu0
    %v1207 = vadd.f32 %v943, %v1206
    %v1208 = vpop.f32.mrb[0].mxu0
    %1209 = vmatprep.mubr.f32.mxu0 0.0
    %1210 = vmatmul.mubr.f32.gmra.mrb[0].mxu0 %v914
    %v1211 = vpop.f32.mrb[0].mxu0
    %v1212 = vadd.f32 %v943, %v1211
    %v1213 = vpop.f32.mrb[0].mxu0
    %1214 = vmatprep.mubr.f32.mxu0 0.0
    %1215 = vmatmul.mubr.f32.gmra.mrb[0].mxu0 %v915
    %v1216 = vpop.f32.mrb[0].mxu0
    %v1217 = vadd.f32 %v943, %v1216
    %v1218 = vpop.f32.mrb[0].mxu0
    %1219 = vmatprep.mubr.f32.mxu0 0.0
    %1220 = vmatmul.mubr.f32.gmra.mrb[0].mxu0 %v916
    %v1221 = vpop.f32.mrb[0].mxu0
    %v1222 = vadd.f32 %v943, %v1221
    %v1223 = vpop.f32.mrb[0].mxu0
    %1224 = vmatprep.mubr.f32.mxu0 0.0
    %1225 = vmatmul.mubr.f32.gmra.mrb[0].mxu0 %v917
    %v1226 = vpop.f32.mrb[0].mxu0
    %v1227 = vadd.f32 %v943, %v1226
    %v1228 = vpop.f32.mrb[0].mxu0
    %1229 = vmatprep.mubr.f32.mxu0 0.0
    %1230 = vmatmul.mubr.f32.gmra.mrb[0].mxu0 %v918
    %v1231 = vpop.f32.mrb[0].mxu0
    %v1232 = vadd.f32 %v943, %v1231
    %v1233 = vpop.f32.mrb[0].mxu0
    %1234 = vmatprep.mubr.f32.mxu0 0.0
    %1235 = vmatmul.mubr.f32.gmra.mrb[0].mxu0 %v919
    %v1236 = vpop.f32.mrb[0].mxu0
    %v1237 = vadd.f32 %v943, %v1236
    %v1238 = vpop.f32.mrb[0].mxu0
    %1239 = vmatprep.mubr.f32.mxu0 0.0
    %1240 = vmatmul.mubr.f32.gmra.mrb[0].mxu0 %v920
    %v1241 = vpop.f32.mrb[0].mxu0
    %v1242 = vadd.f32 %v943, %v1241
    %v1243 = vpop.f32.mrb[0].mxu0
    %1244 = vmatprep.mubr.f32.mxu0 0.0
    %1245 = vmatmul.mubr.f32.gmra.mrb[0].mxu0 %v921
    %v1246 = vpop.f32.mrb[0].mxu0
    %v1247 = vadd.f32 %v943, %v1246
    %v1248 = vpop.f32.mrb[0].mxu0
    %1249 = vdwg.mxu0
    %v1250 = vmul.f32 %v1012, %v318
    %v1251 = vmul.f32 %v1017, %v320
    %v1252 = vmul.f32 %v1022, %v322
    %v1253 = vmul.f32 %v1027, %v324
    %v1254 = vmul.f32 %v1032, %v326
    %v1255 = vmul.f32 %v1037, %v328
    %v1256 = vmul.f32 %v1042, %v330
    %v1257 = vmul.f32 %v1047, %v332
    %v1258 = vmul.f32 %v1052, %v334
    %v1259 = vmul.f32 %v1057, %v336
    %v1260 = vmul.f32 %v1062, %v338
    %v1261 = vmul.f32 %v1067, %v340
    %v1262 = vmul.f32 %v1072, %v342
    %v1263 = vmul.f32 %v1077, %v344
    %v1264 = vmul.f32 %v1082, %v346
    %v1265 = vmul.f32 %v1087, %v348
    %v1266 = vmul.f32 %v1092, %v350
    %v1267 = vmul.f32 %v1097, %v352
    %v1268 = vmul.f32 %v1102, %v354
    %v1269 = vmul.f32 %v1107, %v356
    %v1270 = vmul.f32 %v1112, %v358
    %v1271 = vmul.f32 %v1117, %v360
    %v1272 = vmul.f32 %v1122, %v362
    %v1273 = vmul.f32 %v1127, %v364
    %v1274 = vmul.f32 %v1132, %v366
    %v1275 = vmul.f32 %v1137, %v368
    %v1276 = vmul.f32 %v1142, %v370
    %v1277 = vmul.f32 %v1147, %v372
    %v1278 = vmul.f32 %v1152, %v374
    %v1279 = vmul.f32 %v1157, %v376
    %v1280 = vmul.f32 %v1162, %v378
    %v1281 = vmul.f32 %v1167, %v380
    %v1282 = vmul.f32 %v1172, %v382
    %v1283 = vmul.f32 %v1177, %v384
    %v1284 = vmul.f32 %v1182, %v386
    %v1285 = vmul.f32 %v1187, %v388
    %v1286 = vmul.f32 %v1192, %v390
    %v1287 = vmul.f32 %v1197, %v392
    %v1288 = vmul.f32 %v1202, %v394
    %v1289 = vmul.f32 %v1207, %v396
    %v1290 = vmul.f32 %v1212, %v398
    %v1291 = vmul.f32 %v1217, %v400
    %v1292 = vmul.f32 %v1222, %v402
    %v1293 = vmul.f32 %v1227, %v404
    %v1294 = vmul.f32 %v1232, %v406
    %v1295 = vmul.f32 %v1237, %v408
    %v1296 = vmul.f32 %v1242, %v410
    %v1297 = vmul.f32 %v1247, %v412
    %1298 = vxpose.xlu0.b32.start [1/16] %v1250, 128
    %1299 = vxpose.xlu0.b32.cont [2/16] %v1251, 128
    %1300 = vxpose.xlu0.b32.cont [3/16] %v1252, 128
    %1301 = vxpose.xlu0.b32.cont [4/16] %v1253, 128
    %1302 = vxpose.xlu0.b32.cont [5/16] %v1254, 128
    %1303 = vxpose.xlu0.b32.cont [6/16] %v1255, 128
    %1304 = vxpose.xlu0.b32.cont [7/16] %v1256, 128
    %1305 = vxpose.xlu0.b32.cont [8/16] %v1257, 128
    %1306 = vxpose.xlu0.b32.cont [9/16] %v1258, 128
    %1307 = vxpose.xlu0.b32.cont [10/16] %v1259, 128
    %1308 = vxpose.xlu0.b32.cont [11/16] %v1260, 128
    %1309 = vxpose.xlu0.b32.cont [12/16] %v1261, 128
    %1310 = vxpose.xlu0.b32.cont [13/16] %v1262, 128
    %1311 = vxpose.xlu0.b32.cont [14/16] %v1263, 128
    %1312 = vxpose.xlu0.b32.cont [15/16] %v1264, 128
    %1313 = vxpose.xlu0.b32.end [16/16] %v1265, 128
    %v1314 = vpop.trf.xlu0
    %v1315 = vpop.trf.xlu0
    %v1316 = vpop.trf.xlu0
    %v1317 = vpop.trf.xlu0
    %v1318 = vpop.trf.xlu0
    %v1319 = vpop.trf.xlu0
    %v1320 = vpop.trf.xlu0
    %v1321 = vpop.trf.xlu0
    %v1322 = vpop.trf.xlu0
    %v1323 = vpop.trf.xlu0
    %v1324 = vpop.trf.xlu0
    %v1325 = vpop.trf.xlu0
    %v1326 = vpop.trf.xlu0
    %v1327 = vpop.trf.xlu0
    %v1328 = vpop.trf.xlu0
    %v1329 = vpop.trf.xlu0
    %1330 = vxpose.xlu0.b32.start [1/16] %v1266, 128
    %1331 = vxpose.xlu0.b32.cont [2/16] %v1267, 128
    %1332 = vxpose.xlu0.b32.cont [3/16] %v1268, 128
    %1333 = vxpose.xlu0.b32.cont [4/16] %v1269, 128
    %1334 = vxpose.xlu0.b32.cont [5/16] %v1270, 128
    %1335 = vxpose.xlu0.b32.cont [6/16] %v1271, 128
    %1336 = vxpose.xlu0.b32.cont [7/16] %v1272, 128
    %1337 = vxpose.xlu0.b32.cont [8/16] %v1273, 128
    %1338 = vxpose.xlu0.b32.cont [9/16] %v1274, 128
    %1339 = vxpose.xlu0.b32.cont [10/16] %v1275, 128
    %1340 = vxpose.xlu0.b32.cont [11/16] %v1276, 128
    %1341 = vxpose.xlu0.b32.cont [12/16] %v1277, 128
    %1342 = vxpose.xlu0.b32.cont [13/16] %v1278, 128
    %1343 = vxpose.xlu0.b32.cont [14/16] %v1279, 128
    %1344 = vxpose.xlu0.b32.cont [15/16] %v1280, 128
    %1345 = vxpose.xlu0.b32.end [16/16] %v1281, 128
    %v1346 = vpop.trf.xlu0
    %v1347 = vpop.trf.xlu0
    %v1348 = vpop.trf.xlu0
    %v1349 = vpop.trf.xlu0
    %v1350 = vpop.trf.xlu0
    %v1351 = vpop.trf.xlu0
    %v1352 = vpop.trf.xlu0
    %v1353 = vpop.trf.xlu0
    %v1354 = vpop.trf.xlu0
    %v1355 = vpop.trf.xlu0
    %v1356 = vpop.trf.xlu0
    %v1357 = vpop.trf.xlu0
    %v1358 = vpop.trf.xlu0
    %v1359 = vpop.trf.xlu0
    %v1360 = vpop.trf.xlu0
    %v1361 = vpop.trf.xlu0
    %1362 = vxpose.xlu0.b32.start [1/16] %v1282, 128
    %1363 = vxpose.xlu0.b32.cont [2/16] %v1283, 128
    %1364 = vxpose.xlu0.b32.cont [3/16] %v1284, 128
    %1365 = vxpose.xlu0.b32.cont [4/16] %v1285, 128
    %1366 = vxpose.xlu0.b32.cont [5/16] %v1286, 128
    %1367 = vxpose.xlu0.b32.cont [6/16] %v1287, 128
    %1368 = vxpose.xlu0.b32.cont [7/16] %v1288, 128
    %1369 = vxpose.xlu0.b32.cont [8/16] %v1289, 128
    %1370 = vxpose.xlu0.b32.cont [9/16] %v1290, 128
    %1371 = vxpose.xlu0.b32.cont [10/16] %v1291, 128
    %1372 = vxpose.xlu0.b32.cont [11/16] %v1292, 128
    %1373 = vxpose.xlu0.b32.cont [12/16] %v1293, 128
    %1374 = vxpose.xlu0.b32.cont [13/16] %v1294, 128
    %1375 = vxpose.xlu0.b32.cont [14/16] %v1295, 128
    %1376 = vxpose.xlu0.b32.cont [15/16] %v1296, 128
    %1377 = vxpose.xlu0.b32.end [16/16] %v1297, 128
    %v1378 = vpop.trf.xlu0
    %v1379 = vpop.trf.xlu0
    %v1380 = vpop.trf.xlu0
    %v1381 = vpop.trf.xlu0
    %v1382 = vpop.trf.xlu0
    %v1383 = vpop.trf.xlu0
    %v1384 = vpop.trf.xlu0
    %v1385 = vpop.trf.xlu0
    %v1386 = vpop.trf.xlu0
    %v1387 = vpop.trf.xlu0
    %v1388 = vpop.trf.xlu0
    %v1389 = vpop.trf.xlu0
    %v1390 = vpop.trf.xlu0
    %v1391 = vpop.trf.xlu0
    %v1392 = vpop.trf.xlu0
    %v1393 = vpop.trf.xlu0
    %1394 = vst [vmem:[#allocation3] sm:$0xff] %v1314
    %1395 = vst [vmem:[#allocation3 + $0x8] sm:$0xff] %v1346
    %1396 = vst [vmem:[#allocation3 + $0x10] sm:$0xff] %v1378
    %1397 = vst [vmem:[#allocation3 + $0x18] sm:$0xff] %v1315
    %1398 = vst [vmem:[#allocation3 + $0x20] sm:$0xff] %v1347
    %1399 = vst [vmem:[#allocation3 + $0x28] sm:$0xff] %v1379
    %1400 = vst [vmem:[#allocation3 + $0x30] sm:$0xff] %v1316
    %1401 = vst [vmem:[#allocation3 + $0x38] sm:$0xff] %v1348
    %1402 = vst [vmem:[#allocation3 + $0x40] sm:$0xff] %v1380
    %1403 = vst [vmem:[#allocation3 + $0x48] sm:$0xff] %v1317
    %1404 = vst [vmem:[#allocation3 + $0x50] sm:$0xff] %v1349
    %1405 = vst [vmem:[#allocation3 + $0x58] sm:$0xff] %v1381
    %1406 = vst [vmem:[#allocation3 + $0x60] sm:$0xff] %v1318
    %1407 = vst [vmem:[#allocation3 + $0x68] sm:$0xff] %v1350
    %1408 = vst [vmem:[#allocation3 + $0x70] sm:$0xff] %v1382
    %1409 = vst [vmem:[#allocation3 + $0x78] sm:$0xff] %v1319
    %1410 = vst [vmem:[#allocation3 + $0x80] sm:$0xff] %v1351
    %1411 = vst [vmem:[#allocation3 + $0x88] sm:$0xff] %v1383
    %1412 = vst [vmem:[#allocation3 + $0x90] sm:$0xff] %v1320
    %1413 = vst [vmem:[#allocation3 + $0x98] sm:$0xff] %v1352
    %1414 = vst [vmem:[#allocation3 + $0xa0] sm:$0xff] %v1384
    %1415 = vst [vmem:[#allocation3 + $0xa8] sm:$0xff] %v1321
    %1416 = vst [vmem:[#allocation3 + $0xb0] sm:$0xff] %v1353
    %1417 = vst [vmem:[#allocation3 + $0xb8] sm:$0xff] %v1385
    %1418 = vst [vmem:[#allocation3 + $0xc0] sm:$0xff] %v1322
    %1419 = vst [vmem:[#allocation3 + $0xc8] sm:$0xff] %v1354
    %1420 = vst [vmem:[#allocation3 + $0xd0] sm:$0xff] %v1386
    %1421 = vst [vmem:[#allocation3 + $0xd8] sm:$0xff] %v1323
    %1422 = vst [vmem:[#allocation3 + $0xe0] sm:$0xff] %v1355
    %1423 = vst [vmem:[#allocation3 + $0xe8] sm:$0xff] %v1387
    %1424 = vst [vmem:[#allocation3 + $0xf0] sm:$0xff] %v1324
    %1425 = vst [vmem:[#allocation3 + $0xf8] sm:$0xff] %v1356
    %1426 = vst [vmem:[#allocation3 + $0x100] sm:$0xff] %v1388
    %1427 = vst [vmem:[#allocation3 + $0x108] sm:$0xff] %v1325
    %1428 = vst [vmem:[#allocation3 + $0x110] sm:$0xff] %v1357
    %1429 = vst [vmem:[#allocation3 + $0x118] sm:$0xff] %v1389
    %1430 = vst [vmem:[#allocation3 + $0x120] sm:$0xff] %v1326
    %1431 = vst [vmem:[#allocation3 + $0x128] sm:$0xff] %v1358
    %1432 = vst [vmem:[#allocation3 + $0x130] sm:$0xff] %v1390
    %1433 = vst [vmem:[#allocation3 + $0x138] sm:$0xff] %v1327
    %1434 = vst [vmem:[#allocation3 + $0x140] sm:$0xff] %v1359
    %1435 = vst [vmem:[#allocation3 + $0x148] sm:$0xff] %v1391
    %1436 = vst [vmem:[#allocation3 + $0x150] sm:$0xff] %v1328
    %1437 = vst [vmem:[#allocation3 + $0x158] sm:$0xff] %v1360
    %1438 = vst [vmem:[#allocation3 + $0x160] sm:$0xff] %v1392
    %1439 = vst [vmem:[#allocation3 + $0x168] sm:$0xff] %v1329
    %1440 = vst [vmem:[#allocation3 + $0x170] sm:$0xff] %v1361
    %1441 = vst [vmem:[#allocation3 + $0x178] sm:$0xff] %v1393
    // Predicated region
    $region26: #{tpu_custom_call.1} parent=1 // pred_check
      _
    $region27: #{tpu_custom_call.1} parent=1 // pred_check_branch
      %1443 = sbr.rel (0) target = $region29
    $region28: #{tpu_custom_call.1} parent=1 // pred_region
      %s1445 = ssub.s32 6144, 6144
      %1446 = vsyncadd [#allocation4], %s1445
      %s1447 = sshll.u32 [#allocation3], 4
      %s1448 = int_to_ptr.vmem [resolvable:$true] %s1447
      %1453 = dma.vmem_to_hbm [thread:$0]  %s1448, 6144, %s6, [#allocation4], 384, 384, 24
    $region29: #{tpu_custom_call.1} parent=1 // pred_fallthru
      _
    // Predicated region
    $region30: #{tpu_custom_call.1} parent=1 // pred_check
      _
    $region31: #{tpu_custom_call.1} parent=1 // pred_check_branch
      %1455 = sbr.rel (0) target = $region33
    $region32: #{tpu_custom_call.1} parent=1 // pred_region
      %1456 = dma.done [#allocation4], 6144
    $region33: #{tpu_custom_call.1} parent=1 // pred_fallthru
      _
    %1457 = vsyncpa [#allocation4], 1

</llo_original>
